<compile_context>
chip_gen: v7x
topology: tpu7x:2x2x1
jax: 0.10.0
libtpu: 0.0.40
codegen_flags: <defaults>
</compile_context>

<pallas_src>
import functools

import jax
import jax.numpy as jnp
from jax.experimental import pallas as pl
from jax.experimental.pallas import tpu as pltpu


# ----------------------------- Pallas conv kernel -----------------------------

def _conv_kernel(x_ref, w_ref, scale_ref, shift_ref, o_ref, *,
                 K, TR, W, Cin, TC, relu):
    # x_ref:     (1, TR + 2*pad, W + 2*pad, Cin)  bf16  halo'd row tile of one image
    # w_ref:     (K, K, Cin, TC)                  bf16
    # scale_ref: (1, TC) f32   per-channel scale (1.0 for plain conv, folded BN scale)
    # shift_ref: (1, TC) f32   per-channel shift (conv bias, or folded BN shift)
    # o_ref:     (1, TR, W, TC)
    M = TR * W
    acc = jnp.zeros((M, TC), jnp.float32)
    for dy in range(K):                      # statically unrolled taps -> K*K MXU pushes
        for dx in range(K):
            # Stack the whole row tile: (TR, W, Cin) -> (TR*W, Cin) so the MXU sees M = TR*W rows.
            lhs = x_ref[0, dy:dy + TR, dx:dx + W, :].reshape(M, Cin)
            acc = acc + jnp.dot(lhs, w_ref[dy, dx],
                                preferred_element_type=jnp.float32)

    y = acc * scale_ref[...] + shift_ref[...]          # f32 epilogue
    if relu:
        y = jnp.maximum(y, 0.0)
    o_ref[0] = y.reshape(TR, W, TC).astype(o_ref.dtype)


def _pick_row_tile(H, W, target_m=128):
    """Smallest divisor TR of H with TR*W >= target_m (keeps MXU M-dim fed, VMEM/vregs small)."""
    for tr in range(1, H + 1):
        if H % tr == 0 and tr * W >= target_m:
            return tr
    return H


def conv2d_pallas(x, w, scale, shift, *, relu, out_dtype=jnp.bfloat16):
    """'same'-padded KxK conv + per-channel affine (+ optional ReLU).

    x: (N, H, W, Cin); w: (K, K, Cin, Cout); scale/shift: (Cout,).
    Matmuls run in bf16 with f32 accumulation; output dtype is `out_dtype`.
    """
    N, H, W, Cin = x.shape
    K = w.shape[0]
    Cout = w.shape[-1]
    pad = K // 2

    # Tiny contraction (only conv1_1: Cin=3, K*K*Cin=27): im2col in the XLA wrapper so the kernel
    # runs a single (M, K*K*Cin) x (K*K*Cin, Cout) matmul instead of K*K 3-wide MXU pushes.
    if K > 1 and K * K * Cin <= 128:
        xp = jnp.pad(x, ((0, 0), (pad, pad), (pad, pad), (0, 0)))
        x = jnp.concatenate(
            [xp[:, dy:dy + H, dx:dx + W, :] for dy in range(K) for dx in range(K)],
            axis=-1)
        w = w.reshape(1, 1, K * K * Cin, Cout)
        Cin = K * K * Cin
        K, pad = 1, 0

    x = x.astype(jnp.bfloat16)
    w = w.astype(jnp.bfloat16)

    TR = _pick_row_tile(H, W)              # row tile -> MXU M = TR*W
    R = H // TR
    TC = Cout if Cout <= 256 else 256      # Cout tile (256 matches v6e/v7x MXU width)
    CO = Cout // TC
    TRH = TR + 2 * pad
    Wp = W + 2 * pad

    # Build halo'd row tiles (N*R, TR+2p, W+2p, Cin) once in the wrapper (fused XLA pad+stack).
    if pad:
        xp = jnp.pad(x, ((0, 0), (pad, pad), (pad, pad), (0, 0)))
        xt = jnp.stack([xp[:, r * TR: r * TR + TRH] for r in range(R)], axis=1)
    else:
        xt = x.reshape(N, R, TR, W, Cin)
    xt = xt.reshape(N * R, TRH, Wp, Cin)

    scale2 = scale.reshape(1, Cout).astype(jnp.float32)
    shift2 = shift.reshape(1, Cout).astype(jnp.float32)

    kernel = functools.partial(_conv_kernel, K=K, TR=TR, W=W, Cin=Cin, TC=TC, relu=relu)

    # Grid: (N, Cout tiles, row tiles).  Row tiles vary fastest; the weight block index depends
    # only on the Cout tile, so it is not re-fetched between consecutive row-tile steps.
    return pl.pallas_call(
        kernel,
        out_shape=jax.ShapeDtypeStruct((N, H, W, Cout), out_dtype),
        grid=(N, CO, R),
        in_specs=[
            pl.BlockSpec((1, TRH, Wp, Cin), lambda n, co, r: (n * R + r, 0, 0, 0)),
            pl.BlockSpec((K, K, Cin, TC), lambda n, co, r: (0, 0, 0, co)),
            pl.BlockSpec((1, TC), lambda n, co, r: (0, co)),
            pl.BlockSpec((1, TC), lambda n, co, r: (0, co)),
        ],
        out_specs=pl.BlockSpec((1, TR, W, TC), lambda n, co, r: (n, r, 0, co)),
        compiler_params=pltpu.CompilerParams(
            dimension_semantics=("parallel", "parallel", "parallel"),
        ),
    )(xt, w, scale2, shift2)


def maxpool2x2(x):
    # MaxPool2d(kernel_size=2, stride=2), flooring odd dims like PyTorch.  Plain-JAX glue.
    N, H, W, C = x.shape
    x = x[:, : (H // 2) * 2, : (W // 2) * 2, :]
    return x.reshape(N, H // 2, 2, W // 2, 2, C).max(axis=(2, 4))


# ----------------------------- model definition -----------------------------

# (name, cin, cout, pool_after)  — VGG16 `features` without the final pool5 (encoder layers[:-1])
VGG_CONVS = [
    ("conv1_1", 3, 64, False), ("conv1_2", 64, 64, True),
    ("conv2_1", 64, 128, False), ("conv2_2", 128, 128, True),
    ("conv3_1", 128, 256, False), ("conv3_2", 256, 256, False), ("conv3_3", 256, 256, True),
    ("conv4_1", 256, 512, False), ("conv4_2", 512, 512, False), ("conv4_3", 512, 512, True),
    ("conv5_1", 512, 512, False), ("conv5_2", 512, 512, False), ("conv5_3", 512, 512, False),
]
HYPERCOLUMN = ["conv1_2", "conv3_3", "conv5_3"]
HYPERCOLUMN_CH = {"conv1_2": 64, "conv3_3": 256, "conv5_3": 512}
ADAP_HIDDEN = 64
ADAP_OUT = 128
BN_EPS = 1e-5


def make_conv_params(key, k, cin, cout):
    kw, kb = jax.random.split(key)
    std = (2.0 / (k * k * cin)) ** 0.5
    w = jax.random.normal(kw, (k, k, cin, cout), jnp.float32) * std
    b = jax.random.normal(kb, (cout,), jnp.float32) * 0.01
    return w, b


def make_bn_params(key, c):
    k1, k2, k3, k4 = jax.random.split(key, 4)
    gamma = 1.0 + 0.1 * jax.random.normal(k1, (c,), jnp.float32)
    beta = 0.1 * jax.random.normal(k2, (c,), jnp.float32)
    running_mean = 0.1 * jax.random.normal(k3, (c,), jnp.float32)
    running_var = jax.random.uniform(k4, (c,), jnp.float32, minval=0.5, maxval=1.5)
    return gamma, beta, running_mean, running_var


def build_params(key):
    params = {"vgg": {}, "adap": []}
    for name, cin, cout, _ in VGG_CONVS:
        key, sub = jax.random.split(key)
        params["vgg"][name] = make_conv_params(sub, 3, cin, cout)
    for name in HYPERCOLUMN:
        cin = HYPERCOLUMN_CH[name]
        key, k1, k2, k3 = jax.random.split(key, 4)
        w1, b1 = make_conv_params(k1, 1, cin, ADAP_HIDDEN)          # Conv2d(cin, 64, 1)
        w2, b2 = make_conv_params(k2, 5, ADAP_HIDDEN, ADAP_OUT)     # Conv2d(64, 128, 5, pad=2)
        bn = make_bn_params(k3, ADAP_OUT)                           # BatchNorm2d(128) (eval mode)
        params["adap"].append((w1, b1, w2, b2, bn))
    return params


def s2dnet_forward(image_nhwc, params):
    # image_tensor.repeat(1, 3, 1, 1): tile the channel axis 3x (NCHW channel == NHWC last axis)
    x = jnp.tile(image_nhwc, (1, 1, 1, 3))

    feature_maps = []
    for name, cin, cout, pool_after in VGG_CONVS:
        w, b = params["vgg"][name]
        ones = jnp.ones((cout,), jnp.float32)
        # conv + (inplace) ReLU fused; intermediate activations kept in bf16.
        x = conv2d_pallas(x, w, ones, b, relu=True, out_dtype=jnp.bfloat16)
        if name in HYPERCOLUMN:
            feature_maps.append(x)
        if pool_after:
            x = maxpool2x2(x)

    outs = []
    for i, f in enumerate(feature_maps):
        w1, b1, w2, b2, (gamma, beta, mean, var) = params["adap"][i]
        # Conv2d(cin, 64, 1) + ReLU
        h = conv2d_pallas(f, w1, jnp.ones((ADAP_HIDDEN,), jnp.float32), b1,
                          relu=True, out_dtype=jnp.bfloat16)
        # Conv2d(64, 128, 5, padding=2) + BatchNorm2d(128) (eval), folded into scale/shift
        s = gamma / jnp.sqrt(var + BN_EPS)
        sh = beta + (b2 - mean) * s
        outs.append(conv2d_pallas(h, w2, s, sh, relu=False, out_dtype=jnp.float32))
    return outs


# ----------------------------- main -----------------------------

if __name__ == "__main__":
    key = jax.random.PRNGKey(0)
    key, pkey, ikey, ckey = jax.random.split(key, 4)
    params = build_params(pkey)

    # --- single-conv numerical sanity check against lax.conv (loose tol for bf16 operands) ---
    xc = jax.random.normal(ckey, (2, 16, 16, 64), jnp.float32)
    wc, bc = params["vgg"]["conv1_2"]
    out_pl = conv2d_pallas(xc, wc, jnp.ones((64,), jnp.float32), bc,
                           relu=True, out_dtype=jnp.float32)
    out_ref = jax.lax.conv_general_dilated(
        xc, wc, window_strides=(1, 1), padding="SAME",
        dimension_numbers=("NHWC", "HWIO", "NHWC")) + bc.reshape(1, 1, 1, -1)
    out_ref = jnp.maximum(out_ref, 0.0)
    out_pl, out_ref = jax.block_until_ready((out_pl, out_ref))
    err = float(jnp.max(jnp.abs(out_pl - out_ref)))
    tol = 0.05 * float(jnp.max(jnp.abs(out_ref))) + 1e-2
    assert err <= tol, (err, tol)

    # --- full S2DNet forward ---
    # LoFTR feeds a grayscale [N, 1, H, W] image (repeat(1,3,1,1) -> 3 channels).
    N, C, H, W = 2, 1, 16, 16
    image_nchw = jax.random.normal(ikey, (N, C, H, W), jnp.float32)
    image_nhwc = jnp.transpose(image_nchw, (0, 2, 3, 1))

    outs = jax.jit(s2dnet_forward)(image_nhwc, params)
    outs = jax.block_until_ready(outs)

    expected = [(N, 16, 16, ADAP_OUT), (N, 4, 4, ADAP_OUT), (N, 1, 1, ADAP_OUT)]
    assert [tuple(o.shape) for o in outs] == expected, [o.shape for o in outs]
    assert all(bool(jnp.isfinite(o).all()) for o in outs)
    print("KERNEL_OK")
</pallas_src>

<mosaic_0001>
module attributes {stable_mosaic.version = 11 : i64} {
  func.func @_conv_kernel(%arg0: i32, %arg1: i32, %arg2: i32, %arg3: memref<1x10x18x64xbf16, #tpu.memory_space<vmem>>, %arg4: memref<3x3x64x64xbf16, #tpu.memory_space<vmem>>, %arg5: memref<1x64xf32, #tpu.memory_space<vmem>>, %arg6: memref<1x64xf32, #tpu.memory_space<vmem>>, %arg7: memref<1x8x16x64xf32, #tpu.memory_space<vmem>>) attributes {dimension_semantics = [#tpu.dimension_semantics<parallel>, #tpu.dimension_semantics<parallel>, #tpu.dimension_semantics<parallel>], iteration_bounds = array<i64: 2, 1, 2>, scalar_prefetch = 0 : i64, scratch_operands = 0 : i64, tpu.core_type = #tpu.core_type<tc>, window_params = [{transform_indices = @transform_0, window_bounds = array<i64: 1, 10, 18, 64>}, {transform_indices = @transform_1, window_bounds = array<i64: 3, 3, 64, 64>}, {transform_indices = @transform_2, window_bounds = array<i64: 1, 64>}, {transform_indices = @transform_3, window_bounds = array<i64: 1, 64>}, {transform_indices = @transform_4, window_bounds = array<i64: 1, 8, 16, 64>}]} {
    %cst = arith.constant 0.000000e+00 : f32
    %0 = vector.broadcast %cst : f32 to vector<128x64xf32>
    %c0 = arith.constant 0 : index
    %c0_0 = arith.constant 0 : index
    %c0_1 = arith.constant 0 : index
    %c0_2 = arith.constant 0 : index
    %1 = vector.load %arg3[%c0, %c0_0, %c0_1, %c0_2] : memref<1x10x18x64xbf16, #tpu.memory_space<vmem>>, vector<1x8x16x64xbf16>
    %2 = vector.shape_cast %1 : vector<1x8x16x64xbf16> to vector<8x16x64xbf16>
    %3 = vector.shape_cast %2 : vector<8x16x64xbf16> to vector<128x64xbf16>
    %c0_3 = arith.constant 0 : index
    %c0_4 = arith.constant 0 : index
    %c0_5 = arith.constant 0 : index
    %c0_6 = arith.constant 0 : index
    %4 = vector.load %arg4[%c0_3, %c0_4, %c0_5, %c0_6] : memref<3x3x64x64xbf16, #tpu.memory_space<vmem>>, vector<1x1x64x64xbf16>
    %5 = vector.shape_cast %4 : vector<1x1x64x64xbf16> to vector<64x64xbf16>
    %cst_7 = arith.constant dense<0.000000e+00> : vector<128x64xf32>
    %6 = tpu.matmul %3, %5, %cst_7 {dimension_numbers = #tpu.dot_dimension_numbers<[1], [0], [0], [1], [0, 0, 1, 1], [], []>} : vector<128x64xbf16>, vector<64x64xbf16>, vector<128x64xf32> -> vector<128x64xf32>
    %7 = arith.addf %0, %6 : vector<128x64xf32>
    %c0_8 = arith.constant 0 : index
    %c0_9 = arith.constant 0 : index
    %c1 = arith.constant 1 : index
    %c0_10 = arith.constant 0 : index
    %8 = vector.load %arg3[%c0_8, %c0_9, %c1, %c0_10] : memref<1x10x18x64xbf16, #tpu.memory_space<vmem>>, vector<1x8x16x64xbf16>
    %9 = vector.shape_cast %8 : vector<1x8x16x64xbf16> to vector<8x16x64xbf16>
    %10 = vector.shape_cast %9 : vector<8x16x64xbf16> to vector<128x64xbf16>
    %c0_11 = arith.constant 0 : index
    %c1_12 = arith.constant 1 : index
    %c0_13 = arith.constant 0 : index
    %c0_14 = arith.constant 0 : index
    %11 = vector.load %arg4[%c0_11, %c1_12, %c0_13, %c0_14] : memref<3x3x64x64xbf16, #tpu.memory_space<vmem>>, vector<1x1x64x64xbf16>
    %12 = vector.shape_cast %11 : vector<1x1x64x64xbf16> to vector<64x64xbf16>
    %cst_15 = arith.constant dense<0.000000e+00> : vector<128x64xf32>
    %13 = tpu.matmul %10, %12, %cst_15 {dimension_numbers = #tpu.dot_dimension_numbers<[1], [0], [0], [1], [0, 0, 1, 1], [], []>} : vector<128x64xbf16>, vector<64x64xbf16>, vector<128x64xf32> -> vector<128x64xf32>
    %14 = arith.addf %7, %13 : vector<128x64xf32>
    %c0_16 = arith.constant 0 : index
    %c0_17 = arith.constant 0 : index
    %c2 = arith.constant 2 : index
    %c0_18 = arith.constant 0 : index
    %15 = vector.load %arg3[%c0_16, %c0_17, %c2, %c0_18] : memref<1x10x18x64xbf16, #tpu.memory_space<vmem>>, vector<1x8x16x64xbf16>
    %16 = vector.shape_cast %15 : vector<1x8x16x64xbf16> to vector<8x16x64xbf16>
    %17 = vector.shape_cast %16 : vector<8x16x64xbf16> to vector<128x64xbf16>
    %c0_19 = arith.constant 0 : index
    %c2_20 = arith.constant 2 : index
    %c0_21 = arith.constant 0 : index
    %c0_22 = arith.constant 0 : index
    %18 = vector.load %arg4[%c0_19, %c2_20, %c0_21, %c0_22] : memref<3x3x64x64xbf16, #tpu.memory_space<vmem>>, vector<1x1x64x64xbf16>
    %19 = vector.shape_cast %18 : vector<1x1x64x64xbf16> to vector<64x64xbf16>
    %cst_23 = arith.constant dense<0.000000e+00> : vector<128x64xf32>
    %20 = tpu.matmul %17, %19, %cst_23 {dimension_numbers = #tpu.dot_dimension_numbers<[1], [0], [0], [1], [0, 0, 1, 1], [], []>} : vector<128x64xbf16>, vector<64x64xbf16>, vector<128x64xf32> -> vector<128x64xf32>
    %21 = arith.addf %14, %20 : vector<128x64xf32>
    %c0_24 = arith.constant 0 : index
    %c1_25 = arith.constant 1 : index
    %c0_26 = arith.constant 0 : index
    %c0_27 = arith.constant 0 : index
    %22 = vector.load %arg3[%c0_24, %c1_25, %c0_26, %c0_27] : memref<1x10x18x64xbf16, #tpu.memory_space<vmem>>, vector<1x8x16x64xbf16>
    %23 = vector.shape_cast %22 : vector<1x8x16x64xbf16> to vector<8x16x64xbf16>
    %24 = vector.shape_cast %23 : vector<8x16x64xbf16> to vector<128x64xbf16>
    %c1_28 = arith.constant 1 : index
    %c0_29 = arith.constant 0 : index
    %c0_30 = arith.constant 0 : index
    %c0_31 = arith.constant 0 : index
    %25 = vector.load %arg4[%c1_28, %c0_29, %c0_30, %c0_31] : memref<3x3x64x64xbf16, #tpu.memory_space<vmem>>, vector<1x1x64x64xbf16>
    %26 = vector.shape_cast %25 : vector<1x1x64x64xbf16> to vector<64x64xbf16>
    %cst_32 = arith.constant dense<0.000000e+00> : vector<128x64xf32>
    %27 = tpu.matmul %24, %26, %cst_32 {dimension_numbers = #tpu.dot_dimension_numbers<[1], [0], [0], [1], [0, 0, 1, 1], [], []>} : vector<128x64xbf16>, vector<64x64xbf16>, vector<128x64xf32> -> vector<128x64xf32>
    %28 = arith.addf %21, %27 : vector<128x64xf32>
    %c0_33 = arith.constant 0 : index
    %c1_34 = arith.constant 1 : index
    %c1_35 = arith.constant 1 : index
    %c0_36 = arith.constant 0 : index
    %29 = vector.load %arg3[%c0_33, %c1_34, %c1_35, %c0_36] : memref<1x10x18x64xbf16, #tpu.memory_space<vmem>>, vector<1x8x16x64xbf16>
    %30 = vector.shape_cast %29 : vector<1x8x16x64xbf16> to vector<8x16x64xbf16>
    %31 = vector.shape_cast %30 : vector<8x16x64xbf16> to vector<128x64xbf16>
    %c1_37 = arith.constant 1 : index
    %c1_38 = arith.constant 1 : index
    %c0_39 = arith.constant 0 : index
    %c0_40 = arith.constant 0 : index
    %32 = vector.load %arg4[%c1_37, %c1_38, %c0_39, %c0_40] : memref<3x3x64x64xbf16, #tpu.memory_space<vmem>>, vector<1x1x64x64xbf16>
    %33 = vector.shape_cast %32 : vector<1x1x64x64xbf16> to vector<64x64xbf16>
    %cst_41 = arith.constant dense<0.000000e+00> : vector<128x64xf32>
    %34 = tpu.matmul %31, %33, %cst_41 {dimension_numbers = #tpu.dot_dimension_numbers<[1], [0], [0], [1], [0, 0, 1, 1], [], []>} : vector<128x64xbf16>, vector<64x64xbf16>, vector<128x64xf32> -> vector<128x64xf32>
    %35 = arith.addf %28, %34 : vector<128x64xf32>
    %c0_42 = arith.constant 0 : index
    %c1_43 = arith.constant 1 : index
    %c2_44 = arith.constant 2 : index
    %c0_45 = arith.constant 0 : index
    %36 = vector.load %arg3[%c0_42, %c1_43, %c2_44, %c0_45] : memref<1x10x18x64xbf16, #tpu.memory_space<vmem>>, vector<1x8x16x64xbf16>
    %37 = vector.shape_cast %36 : vector<1x8x16x64xbf16> to vector<8x16x64xbf16>
    %38 = vector.shape_cast %37 : vector<8x16x64xbf16> to vector<128x64xbf16>
    %c1_46 = arith.constant 1 : index
    %c2_47 = arith.constant 2 : index
    %c0_48 = arith.constant 0 : index
    %c0_49 = arith.constant 0 : index
    %39 = vector.load %arg4[%c1_46, %c2_47, %c0_48, %c0_49] : memref<3x3x64x64xbf16, #tpu.memory_space<vmem>>, vector<1x1x64x64xbf16>
    %40 = vector.shape_cast %39 : vector<1x1x64x64xbf16> to vector<64x64xbf16>
    %cst_50 = arith.constant dense<0.000000e+00> : vector<128x64xf32>
    %41 = tpu.matmul %38, %40, %cst_50 {dimension_numbers = #tpu.dot_dimension_numbers<[1], [0], [0], [1], [0, 0, 1, 1], [], []>} : vector<128x64xbf16>, vector<64x64xbf16>, vector<128x64xf32> -> vector<128x64xf32>
    %42 = arith.addf %35, %41 : vector<128x64xf32>
    %c0_51 = arith.constant 0 : index
    %c2_52 = arith.constant 2 : index
    %c0_53 = arith.constant 0 : index
    %c0_54 = arith.constant 0 : index
    %43 = vector.load %arg3[%c0_51, %c2_52, %c0_53, %c0_54] : memref<1x10x18x64xbf16, #tpu.memory_space<vmem>>, vector<1x8x16x64xbf16>
    %44 = vector.shape_cast %43 : vector<1x8x16x64xbf16> to vector<8x16x64xbf16>
    %45 = vector.shape_cast %44 : vector<8x16x64xbf16> to vector<128x64xbf16>
    %c2_55 = arith.constant 2 : index
    %c0_56 = arith.constant 0 : index
    %c0_57 = arith.constant 0 : index
    %c0_58 = arith.constant 0 : index
    %46 = vector.load %arg4[%c2_55, %c0_56, %c0_57, %c0_58] : memref<3x3x64x64xbf16, #tpu.memory_space<vmem>>, vector<1x1x64x64xbf16>
    %47 = vector.shape_cast %46 : vector<1x1x64x64xbf16> to vector<64x64xbf16>
    %cst_59 = arith.constant dense<0.000000e+00> : vector<128x64xf32>
    %48 = tpu.matmul %45, %47, %cst_59 {dimension_numbers = #tpu.dot_dimension_numbers<[1], [0], [0], [1], [0, 0, 1, 1], [], []>} : vector<128x64xbf16>, vector<64x64xbf16>, vector<128x64xf32> -> vector<128x64xf32>
    %49 = arith.addf %42, %48 : vector<128x64xf32>
    %c0_60 = arith.constant 0 : index
    %c2_61 = arith.constant 2 : index
    %c1_62 = arith.constant 1 : index
    %c0_63 = arith.constant 0 : index
    %50 = vector.load %arg3[%c0_60, %c2_61, %c1_62, %c0_63] : memref<1x10x18x64xbf16, #tpu.memory_space<vmem>>, vector<1x8x16x64xbf16>
    %51 = vector.shape_cast %50 : vector<1x8x16x64xbf16> to vector<8x16x64xbf16>
    %52 = vector.shape_cast %51 : vector<8x16x64xbf16> to vector<128x64xbf16>
    %c2_64 = arith.constant 2 : index
    %c1_65 = arith.constant 1 : index
    %c0_66 = arith.constant 0 : index
    %c0_67 = arith.constant 0 : index
    %53 = vector.load %arg4[%c2_64, %c1_65, %c0_66, %c0_67] : memref<3x3x64x64xbf16, #tpu.memory_space<vmem>>, vector<1x1x64x64xbf16>
    %54 = vector.shape_cast %53 : vector<1x1x64x64xbf16> to vector<64x64xbf16>
    %cst_68 = arith.constant dense<0.000000e+00> : vector<128x64xf32>
    %55 = tpu.matmul %52, %54, %cst_68 {dimension_numbers = #tpu.dot_dimension_numbers<[1], [0], [0], [1], [0, 0, 1, 1], [], []>} : vector<128x64xbf16>, vector<64x64xbf16>, vector<128x64xf32> -> vector<128x64xf32>
    %56 = arith.addf %49, %55 : vector<128x64xf32>
    %c0_69 = arith.constant 0 : index
    %c2_70 = arith.constant 2 : index
    %c2_71 = arith.constant 2 : index
    %c0_72 = arith.constant 0 : index
    %57 = vector.load %arg3[%c0_69, %c2_70, %c2_71, %c0_72] : memref<1x10x18x64xbf16, #tpu.memory_space<vmem>>, vector<1x8x16x64xbf16>
    %58 = vector.shape_cast %57 : vector<1x8x16x64xbf16> to vector<8x16x64xbf16>
    %59 = vector.shape_cast %58 : vector<8x16x64xbf16> to vector<128x64xbf16>
    %c2_73 = arith.constant 2 : index
    %c2_74 = arith.constant 2 : index
    %c0_75 = arith.constant 0 : index
    %c0_76 = arith.constant 0 : index
    %60 = vector.load %arg4[%c2_73, %c2_74, %c0_75, %c0_76] : memref<3x3x64x64xbf16, #tpu.memory_space<vmem>>, vector<1x1x64x64xbf16>
    %61 = vector.shape_cast %60 : vector<1x1x64x64xbf16> to vector<64x64xbf16>
    %cst_77 = arith.constant dense<0.000000e+00> : vector<128x64xf32>
    %62 = tpu.matmul %59, %61, %cst_77 {dimension_numbers = #tpu.dot_dimension_numbers<[1], [0], [0], [1], [0, 0, 1, 1], [], []>} : vector<128x64xbf16>, vector<64x64xbf16>, vector<128x64xf32> -> vector<128x64xf32>
    %63 = arith.addf %56, %62 : vector<128x64xf32>
    %c0_78 = arith.constant 0 : index
    %c0_79 = arith.constant 0 : index
    %64 = vector.load %arg5[%c0_78, %c0_79] : memref<1x64xf32, #tpu.memory_space<vmem>>, vector<1x64xf32>
    %65 = vector.broadcast %64 : vector<1x64xf32> to vector<128x64xf32>
    %66 = arith.mulf %63, %65 : vector<128x64xf32>
    %c0_80 = arith.constant 0 : index
    %c0_81 = arith.constant 0 : index
    %67 = vector.load %arg6[%c0_80, %c0_81] : memref<1x64xf32, #tpu.memory_space<vmem>>, vector<1x64xf32>
    %68 = vector.broadcast %67 : vector<1x64xf32> to vector<128x64xf32>
    %69 = arith.addf %66, %68 : vector<128x64xf32>
    %cst_82 = arith.constant 0.000000e+00 : f32
    %70 = vector.broadcast %cst_82 : f32 to vector<128x64xf32>
    %71 = arith.maximumf %69, %70 : vector<128x64xf32>
    %72 = vector.shape_cast %71 : vector<128x64xf32> to vector<8x16x64xf32>
    %c0_83 = arith.constant 0 : index
    %c0_84 = arith.constant 0 : index
    %c0_85 = arith.constant 0 : index
    %c0_86 = arith.constant 0 : index
    %73 = vector.load %arg7[%c0_83, %c0_84, %c0_85, %c0_86] : memref<1x8x16x64xf32, #tpu.memory_space<vmem>>, vector<1x8x16x64xf32>
    %74 = vector.shape_cast %73 : vector<1x8x16x64xf32> to vector<8x16x64xf32>
    %75 = vector.shape_cast %72 : vector<8x16x64xf32> to vector<1x8x16x64xf32>
    tpu.vector_store %arg7[%c0_83, %c0_84, %c0_85, %c0_86], %75 {strides = array<i32>} : memref<1x8x16x64xf32, #tpu.memory_space<vmem>>, vector<1x8x16x64xf32>,
    return
  }
  func.func @transform_0(%arg0: i32, %arg1: i32, %arg2: i32) -> (i32, i32, i32, i32) {
    %c2_i32 = arith.constant 2 : i32
    %0 = arith.muli %arg0, %c2_i32 : i32
    %1 = arith.addi %0, %arg2 : i32
    %c0_i32 = arith.constant 0 : i32
    %c0_i32_0 = arith.constant 0 : i32
    %c0_i32_1 = arith.constant 0 : i32
    %c0_i32_2 = arith.constant 0 : i32
    return %1, %c0_i32, %c0_i32_0, %c0_i32_1 : i32, i32, i32, i32
  }
  func.func @transform_1(%arg0: i32, %arg1: i32, %arg2: i32) -> (i32, i32, i32, i32) {
    %c0_i32 = arith.constant 0 : i32
    %c0_i32_0 = arith.constant 0 : i32
    %c0_i32_1 = arith.constant 0 : i32
    %c0_i32_2 = arith.constant 0 : i32
    return %c0_i32, %c0_i32_0, %c0_i32_1, %arg1 : i32, i32, i32, i32
  }
  func.func @transform_2(%arg0: i32, %arg1: i32, %arg2: i32) -> (i32, i32) {
    %c0_i32 = arith.constant 0 : i32
    %c0_i32_0 = arith.constant 0 : i32
    return %c0_i32, %arg1 : i32, i32
  }
  func.func @transform_3(%arg0: i32, %arg1: i32, %arg2: i32) -> (i32, i32) {
    %c0_i32 = arith.constant 0 : i32
    %c0_i32_0 = arith.constant 0 : i32
    return %c0_i32, %arg1 : i32, i32
  }
  func.func @transform_4(%arg0: i32, %arg1: i32, %arg2: i32) -> (i32, i32, i32, i32) {
    %c0_i32 = arith.constant 0 : i32
    %c0_i32_0 = arith.constant 0 : i32
    return %arg0, %arg2, %c0_i32, %arg1 : i32, i32, i32, i32
  }
}

</mosaic_0001>

<llo_original>
// kernel: tpu_custom_call.1
$region0: #{tpu_custom_call.1}
  #allocation0 [shape = 'u32[]', space=smem, size = 0x4, offset = 0x4, fixed_abs, tag = 'smem constant byte address 0x4 - core index']
  #allocation1 [shape = 'u32[144,128]{1,0:T(1,128)}', space=vmem, size = 0x12000, scoped, tag = 'internal scratch']
  %s0 = inlined_call_operand.vmem [shape: bf16[4,10,18,64], index: 0, kind: input, shape index: {}]
  %s1 = inlined_call_operand.vmem [shape: bf16[3,3,64,64], index: 1, kind: input, shape index: {}]
  %s2 = inlined_call_operand.vmem [shape: f32[1,64], index: 2, kind: input, shape index: {}]
  %s3 = inlined_call_operand.vmem [shape: f32[1,64], index: 3, kind: input, shape index: {}]
  %s4 = inlined_call_operand.hbm [shape: f32[2,16,16,64], index: 4, kind: output, shape index: {}]
  %s5 = sld [smem:[#allocation0]]
  $region49: #{tpu_custom_call.1} parent=0
    _
  %s7 = ssub.s32 1, %s5
  %s8 = scalar_select 0, %s7, %s5
  $region1: #{tpu_custom_call.1} parent=0
    #allocation2 [shape = 'u8[131072]{0}', space=vmem, size = 0x20000, scoped, tag = 'output window, operand 0']
    #allocation3 [shape = 's32[2]{0}', space=sflag, size = 0x8, scoped, tag = 'scoped memory for tpu_custom_call.1']
    %9 = vsyncpa [#allocation3], 0
    %s10 = scalar_lea.sflag [#allocation3], 1
    %11 = vsyncpa %s10, 0
    loop: start=0, step=1, limit=6
    $region2: #{tpu_custom_call.1} parent=1 // loop_pre_header
      _
    $region3: #{tpu_custom_call.1} parent=1 // loop_header
      %s13 = sphi 0, %s17
      %p14 = scmp.ge.s32.totalorder %s13, 6
      %s20 = sphi 0, %s39
      %s21 = sphi 0, %s35
      %s22 = sphi 0, %s31
      %s23 = sphi 0, %s20
      %s24 = sphi 0, %s21
      %s25 = sphi 0, %s22
      %s26 = sphi 0, %s23
      %s27 = sphi 0, %s24
      %s28 = sphi 0, %s25
      %s46 = sphi 0, %s48
      %s49 = sphi 0, %s46
      %s50 = sphi 0, %s49
      %s66 = sphi 0, %s50
      %s72 = sphi 0, %s74
      %s75 = sphi 0, %s72
      %s76 = sphi 0, %s75
      %s92 = sphi 0, %s76
      %s98 = sphi 0, %s100
      %s101 = sphi 0, %s98
      %s102 = sphi 0, %s101
      %s118 = sphi 0, %s102
      %s124 = sphi 0, %s126
      %s127 = sphi 0, %s124
      %s128 = sphi 0, %s127
      %s144 = sphi 0, %s128
      %s154 = sphi 0, %s156
      %s157 = sphi 0, %s154
      %s158 = sphi 0, %s157
      %s174 = sphi 0, %s158
    $region4: #{tpu_custom_call.1} parent=1 // loop_header_branch
      %16 = sbr.rel (%p14) target = $region8
    $region5: #{tpu_custom_call.1} parent=1 // loop_body
      %s18 = ssub.s32 %s13, 1
      %s19 = ssub.s32 %s13, 2
      %s29 = sadd.s32 1, %s22
      %p30 = scmp.ge.s32.totalorder %s29, 2
      %s31 = scalar_select %p30, 0, %s29
      %s32 = sadd.s32 1, %s21
      %s33 = scalar_select %p30, %s32, %s21
      %p34 = scmp.ge.s32.totalorder %s33, 1
      %s35 = scalar_select %p34, 0, %s33
      %s36 = sadd.s32 1, %s20
      %s37 = scalar_select %p34, %s36, %s20
      %p38 = scmp.ge.s32.totalorder %s37, 2
      %s39 = scalar_select %p38, 0, %s37
      %s40 = smul.u32 %s20, 2
      %s41 = sadd.s32 %s40, %s22
      %s42 = smul.u32 %s39, 2
      %s43 = sadd.s32 %s42, %s31
      %s44 = ssub.s32 %s41, %s43
      %p45 = scmp.eq.s32.totalorder %s44, 0
      %s47 = sadd.s32 %s46, 1
      %s48 = scalar_select %p45, %s46, %s47
      %p51 = pneg %p45
      %p52 = scmp.eq.s32.totalorder %s13, 3
      %p53 = por %p51, %p52
      %p54 = scmp.ne.s32.totalorder %s46, %s49
      %p55 = scmp.eq.s32.totalorder %s13, 0
      %p56 = por %p54, %p55
      %p57 = scmp.ne.s32.totalorder %s46, %s49
      %p58 = scmp.eq.s32.totalorder %s18, 3
      %p59 = por %p57, %p58
      %p60 = scmp.ne.s32.totalorder %s49, %s50
      %p61 = scmp.eq.s32.totalorder %s18, 0
      %p62 = por %p60, %p61
      %p63 = scmp.ne.s32.totalorder %s49, %s50
      %p64 = scmp.eq.s32.totalorder %s19, 3
      %p65 = por %p63, %p64
      %p67 = scmp.ne.s32.totalorder %s50, %s66
      %p68 = scmp.eq.s32.totalorder %s19, 0
      %p69 = por %p67, %p68
      %s70 = ssub.s32 %s21, %s35
      %p71 = scmp.eq.s32.totalorder %s70, 0
      %s73 = sadd.s32 %s72, 1
      %s74 = scalar_select %p71, %s72, %s73
      %p77 = pneg %p71
      %p78 = scmp.eq.s32.totalorder %s13, 3
      %p79 = por %p77, %p78
      %p80 = scmp.ne.s32.totalorder %s72, %s75
      %p81 = scmp.eq.s32.totalorder %s13, 0
      %p82 = por %p80, %p81
      %p83 = scmp.ne.s32.totalorder %s72, %s75
      %p84 = scmp.eq.s32.totalorder %s18, 3
      %p85 = por %p83, %p84
      %p86 = scmp.ne.s32.totalorder %s75, %s76
      %p87 = scmp.eq.s32.totalorder %s18, 0
      %p88 = por %p86, %p87
      %p89 = scmp.ne.s32.totalorder %s75, %s76
      %p90 = scmp.eq.s32.totalorder %s19, 3
      %p91 = por %p89, %p90
      %p93 = scmp.ne.s32.totalorder %s76, %s92
      %p94 = scmp.eq.s32.totalorder %s19, 0
      %p95 = por %p93, %p94
      %s96 = ssub.s32 %s21, %s35
      %p97 = scmp.eq.s32.totalorder %s96, 0
      %s99 = sadd.s32 %s98, 1
      %s100 = scalar_select %p97, %s98, %s99
      %p103 = pneg %p97
      %p104 = scmp.eq.s32.totalorder %s13, 3
      %p105 = por %p103, %p104
      %p106 = scmp.ne.s32.totalorder %s98, %s101
      %p107 = scmp.eq.s32.totalorder %s13, 0
      %p108 = por %p106, %p107
      %p109 = scmp.ne.s32.totalorder %s98, %s101
      %p110 = scmp.eq.s32.totalorder %s18, 3
      %p111 = por %p109, %p110
      %p112 = scmp.ne.s32.totalorder %s101, %s102
      %p113 = scmp.eq.s32.totalorder %s18, 0
      %p114 = por %p112, %p113
      %p115 = scmp.ne.s32.totalorder %s101, %s102
      %p116 = scmp.eq.s32.totalorder %s19, 3
      %p117 = por %p115, %p116
      %p119 = scmp.ne.s32.totalorder %s102, %s118
      %p120 = scmp.eq.s32.totalorder %s19, 0
      %p121 = por %p119, %p120
      %s122 = ssub.s32 %s21, %s35
      %p123 = scmp.eq.s32.totalorder %s122, 0
      %s125 = sadd.s32 %s124, 1
      %s126 = scalar_select %p123, %s124, %s125
      %p129 = pneg %p123
      %p130 = scmp.eq.s32.totalorder %s13, 3
      %p131 = por %p129, %p130
      %p132 = scmp.ne.s32.totalorder %s124, %s127
      %p133 = scmp.eq.s32.totalorder %s13, 0
      %p134 = por %p132, %p133
      %p135 = scmp.ne.s32.totalorder %s124, %s127
      %p136 = scmp.eq.s32.totalorder %s18, 3
      %p137 = por %p135, %p136
      %p138 = scmp.ne.s32.totalorder %s127, %s128
      %p139 = scmp.eq.s32.totalorder %s18, 0
      %p140 = por %p138, %p139
      %p141 = scmp.ne.s32.totalorder %s127, %s128
      %p142 = scmp.eq.s32.totalorder %s19, 3
      %p143 = por %p141, %p142
      %p145 = scmp.ne.s32.totalorder %s128, %s144
      %p146 = scmp.eq.s32.totalorder %s19, 0
      %p147 = por %p145, %p146
      %s148 = ssub.s32 %s20, %s39
      %s149 = ssub.s32 %s22, %s31
      %s150 = sor.u32 %s148, %s149
      %s151 = ssub.s32 %s21, %s35
      %s152 = sor.u32 %s150, %s151
      %p153 = scmp.eq.s32.totalorder %s152, 0
      %s155 = sadd.s32 %s154, 1
      %s156 = scalar_select %p153, %s154, %s155
      %p159 = pneg %p153
      %p160 = scmp.eq.s32.totalorder %s13, 3
      %p161 = por %p159, %p160
      %p162 = scmp.ne.s32.totalorder %s154, %s157
      %p163 = scmp.eq.s32.totalorder %s13, 0
      %p164 = por %p162, %p163
      %p165 = scmp.ne.s32.totalorder %s154, %s157
      %p166 = scmp.eq.s32.totalorder %s18, 3
      %p167 = por %p165, %p166
      %p168 = scmp.ne.s32.totalorder %s157, %s158
      %p169 = scmp.eq.s32.totalorder %s18, 0
      %p170 = por %p168, %p169
      %p171 = scmp.ne.s32.totalorder %s157, %s158
      %p172 = scmp.eq.s32.totalorder %s19, 3
      %p173 = por %p171, %p172
      %p175 = scmp.ne.s32.totalorder %s158, %s174
      %p176 = scmp.eq.s32.totalorder %s19, 0
      %p177 = por %p175, %p176
      %p178 = scmp.le.s32.totalorder 1, %s13
      %p179 = scmp.lt.s32.totalorder %s13, 5
      %p180 = pnand %p178, %p179
      %p181 = pneg %p180
      // Predicated region
      $region9: #{tpu_custom_call.1} parent=5 // pred_check
        _
      $region10: #{tpu_custom_call.1} parent=5 // pred_check_branch
        %183 = sbr.rel (%p180) target = $region12
      $region11: #{tpu_custom_call.1} parent=5 // pred_region
        %s184 = ssub.s32 %s13, 1
        // Predicated region
        $region13: #{tpu_custom_call.1} parent=11 // pred_check
          %p185 = pneg %p88
        $region14: #{tpu_custom_call.1} parent=11 // pred_check_branch
          %187 = sbr.rel (%p185) target = $region16
        $region15: #{tpu_custom_call.1} parent=11 // pred_region
          %p188 = scmp.lt.s32.totalorder %s24, 0
          %s189 = scalar_select %p188, %s24, 0
          %s190 = smul.addr %s189, 4
          %s191 = scalar_lea.vmem %s1, %s190
        $region16: #{tpu_custom_call.1} parent=11 // pred_fallthru
          _
        // Predicated region
        $region17: #{tpu_custom_call.1} parent=11 // pred_check
          %p192 = pneg %p114
        $region18: #{tpu_custom_call.1} parent=11 // pred_check_branch
          %194 = sbr.rel (%p192) target = $region20
        $region19: #{tpu_custom_call.1} parent=11 // pred_region
          %p195 = scmp.lt.s32.totalorder %s24, 0
          %s196 = scalar_select %p195, %s24, 0
          %s197 = scalar_lea.vmem %s2, %s196
        $region20: #{tpu_custom_call.1} parent=11 // pred_fallthru
          _
        // Predicated region
        $region21: #{tpu_custom_call.1} parent=11 // pred_check
          %p198 = pneg %p140
        $region22: #{tpu_custom_call.1} parent=11 // pred_check_branch
          %200 = sbr.rel (%p198) target = $region24
        $region23: #{tpu_custom_call.1} parent=11 // pred_region
          %p201 = scmp.lt.s32.totalorder %s24, 0
          %s202 = scalar_select %p201, %s24, 0
          %s203 = scalar_lea.vmem %s3, %s202
        $region24: #{tpu_custom_call.1} parent=11 // pred_fallthru
          _
      $region12: #{tpu_custom_call.1} parent=5 // pred_fallthru
        _
      %p204 = scmp.lt.s32.totalorder %s13, 4
      // Predicated region
      $region25: #{tpu_custom_call.1} parent=5 // pred_check
        %p205 = pneg %p204
      $region26: #{tpu_custom_call.1} parent=5 // pred_check_branch
        %207 = sbr.rel (%p205) target = $region28
      $region27: #{tpu_custom_call.1} parent=5 // pred_region
        // Predicated region
        $region29: #{tpu_custom_call.1} parent=27 // pred_check
          %p208 = pneg %p56
        $region30: #{tpu_custom_call.1} parent=27 // pred_check_branch
          %210 = sbr.rel (%p208) target = $region32
        $region31: #{tpu_custom_call.1} parent=27 // pred_region
          %s211 = smul.u32 %s20, 2
          %s212 = sadd.s32 %s211, %s22
          %p213 = scmp.lt.s32.totalorder %s212, 3
          %s214 = scalar_select %p213, %s212, 3
          %s215 = smul.addr %s214, 30
          %s216 = smul.addr %s215, 4
          %s217 = scalar_lea.vmem %s0, %s216
          %s218 = smul.u32 %s20, 2
          %s219 = sadd.s32 %s218, %s22
        $region32: #{tpu_custom_call.1} parent=27 // pred_fallthru
          _
      $region28: #{tpu_custom_call.1} parent=5 // pred_fallthru
        _
      %p220 = scmp.le.s32.totalorder 1, %s13
      %p221 = scmp.lt.s32.totalorder %s13, 5
      %p222 = pnand %p220, %p221
      %p223 = pneg %p222
      // Predicated region
      $region33: #{tpu_custom_call.1} parent=5 // pred_check
        _
      $region34: #{tpu_custom_call.1} parent=5 // pred_check_branch
        %225 = sbr.rel (%p222) target = $region36
      $region35: #{tpu_custom_call.1} parent=5 // pred_region
        %s226 = ssub.s32 %s13, 1
        %s227 = smul.u32 %s23, 2
        %s228 = sadd.s32 %s227, %s25
        %p229 = scmp.lt.s32.totalorder %s228, 3
        %s230 = scalar_select %p229, %s228, 3
        %s231 = smul.addr %s230, 30
        %s232 = smul.addr %s231, 4
        %s233 = scalar_lea.vmem %s0, %s232
        %p234 = pneg %p62
        %p235 = pneg %p59
        %p236 = scmp.lt.s32.totalorder %s24, 0
        %s237 = scalar_select %p236, %s24, 0
        %s238 = smul.addr %s237, 4
        %s239 = scalar_lea.vmem %s1, %s238
        %p240 = pneg %p88
        %p241 = pneg %p85
        %p242 = scmp.lt.s32.totalorder %s24, 0
        %s243 = scalar_select %p242, %s24, 0
        %s244 = scalar_lea.vmem %s2, %s243
        %p245 = pneg %p114
        %p246 = pneg %p111
        %p247 = scmp.lt.s32.totalorder %s24, 0
        %s248 = scalar_select %p247, %s24, 0
        %s249 = scalar_lea.vmem %s3, %s248
        %p250 = pneg %p140
        %p251 = pneg %p137
        %p252 = pneg %p170
        %p253 = pneg %p167
        %s254 = sand.u32 %s157, 1
        %s255 = scalar_lea.sflag [#allocation3], %s254
        %s256 = sand.u32 %s157, 1
        %s257 = smul.addr %s256, 128
        %s258 = scalar_lea.vmem [#allocation2], %s257
        %s259 = smul.u32 %s23, 2
        %s260 = sadd.s32 %s259, %s25
        %p261 = scmp.lt.s32.totalorder %s260, 3
        %s262 = scalar_select %p261, %s260, 3
        %s263 = smul.addr %s262, 30
        %s264 = smul.addr %s263, 4
        %s265 = scalar_lea.vmem %s0, %s264
        %s266 = smul.u32 %s23, 2
        %s267 = sadd.s32 %s266, %s25
        %p268 = scmp.lt.s32.totalorder %s24, 0
        %s269 = scalar_select %p268, %s24, 0
        %s270 = smul.addr %s269, 4
        %s271 = scalar_lea.vmem %s1, %s270
        %p272 = scmp.lt.s32.totalorder %s24, 0
        %s273 = scalar_select %p272, %s24, 0
        %s274 = scalar_lea.vmem %s2, %s273
        %p275 = scmp.lt.s32.totalorder %s24, 0
        %s276 = scalar_select %p275, %s24, 0
        %s277 = scalar_lea.vmem %s3, %s276
        %s278 = smul.u32 8, %s25
        %v280 = vld [vmem:[%s265] sm:$0xf]
        %v281 = vld [vmem:[%s265 + $0x4] sm:$0xf]
        %v282 = vld [vmem:[%s265 + $0xc] sm:$0xf]
        %v283 = vld [vmem:[%s265 + $0x10] sm:$0xf]
        %v284 = vld [vmem:[%s265 + $0x18] sm:$0xf]
        %v285 = vld [vmem:[%s265 + $0x1c] sm:$0xf]
        %v286 = vld [vmem:[%s265 + $0x24] sm:$0xf]
        %v287 = vld [vmem:[%s265 + $0x28] sm:$0xf]
        %v288 = vld [vmem:[%s265 + $0x30] sm:$0xf]
        %v289 = vld [vmem:[%s265 + $0x34] sm:$0xf]
        %v290 = vld [vmem:[%s265 + $0x3c] sm:$0xf]
        %v291 = vld [vmem:[%s265 + $0x40] sm:$0xf]
        %v292 = vld [vmem:[%s265 + $0x48] sm:$0xf]
        %v293 = vld [vmem:[%s265 + $0x4c] sm:$0xf]
        %v294 = vld [vmem:[%s265 + $0x54] sm:$0xf]
        %v295 = vld [vmem:[%s265 + $0x58] sm:$0xf]
        %v296 = vld [vmem:[%s271] sm:$0xf]
        %v297 = vld [vmem:[%s271 + $0x4] sm:$0xf]
        %v298 = vld [vmem:[%s271 + $0x8] sm:$0xf]
        %v299 = vld [vmem:[%s271 + $0xc] sm:$0xf]
        %v300 = vld [vmem:[%s271 + $0x10] sm:$0xf]
        %v301 = vld [vmem:[%s271 + $0x14] sm:$0xf]
        %v302 = vld [vmem:[%s271 + $0x18] sm:$0xf]
        %v303 = vld [vmem:[%s271 + $0x1c] sm:$0xf]
        %v304 = vld [vmem:[%s265 + $0x8] sm:$0x1]
        %v305 = vld [vmem:[%s265 + $0x14] sm:$0x1]
        %v306 = vld [vmem:[%s265 + $0x20] sm:$0x1]
        %v307 = vld [vmem:[%s265 + $0x2c] sm:$0x1]
        %v308 = vld [vmem:[%s265 + $0x38] sm:$0x1]
        %v309 = vld [vmem:[%s265 + $0x44] sm:$0x1]
        %v310 = vld [vmem:[%s265 + $0x50] sm:$0x1]
        %v311 = vld [vmem:[%s265 + $0x5c] sm:$0x1]
        %vm312 = vsmask.f32 3328
        %vm313 = vsmask.f32 7440
        %vm314 = vmor %vm312, %vm313
        %v316 = vshrl.u32 %v280, 16
        %v318 = vrot.slane %v316, 4
        %v319 = vshll.u32 %v280, 16
        %v321 = vrot.slane %v319, 5
        %v322 = vor.u32 %v318, %v321
        %v323 = vrot.slane %v322, 4
        %v325 = vshll.u32 %v281, 16
        %v327 = vrot.slane %v325, 5
        %v328 = vsel %vm314, %v323, %v327
        %v329 = vshrl.u32 %v281, 16
        %v331 = vrot.slane %v329, 4
        %v332 = vor.u32 %v331, %v327
        %v333 = vrot.slane %v332, 4
        %v335 = vshll.u32 %v304, 16
        %v337 = vrot.slane %v335, 5
        %v338 = vsel %vm314, %v333, %v337
        %v340 = vshrl.u32 %v282, 16
        %v342 = vrot.slane %v340, 4
        %v343 = vshll.u32 %v282, 16
        %v345 = vrot.slane %v343, 5
        %v346 = vor.u32 %v342, %v345
        %v347 = vrot.slane %v346, 4
        %v349 = vshll.u32 %v283, 16
        %v351 = vrot.slane %v349, 5
        %v352 = vsel %vm314, %v347, %v351
        %v353 = vshrl.u32 %v283, 16
        %v355 = vrot.slane %v353, 4
        %v356 = vor.u32 %v355, %v351
        %v357 = vrot.slane %v356, 4
        %v359 = vshll.u32 %v305, 16
        %v361 = vrot.slane %v359, 5
        %v362 = vsel %vm314, %v357, %v361
        %v364 = vshrl.u32 %v284, 16
        %v366 = vrot.slane %v364, 4
        %v367 = vshll.u32 %v284, 16
        %v369 = vrot.slane %v367, 5
        %v370 = vor.u32 %v366, %v369
        %v371 = vrot.slane %v370, 4
        %v373 = vshll.u32 %v285, 16
        %v375 = vrot.slane %v373, 5
        %v376 = vsel %vm314, %v371, %v375
        %v377 = vshrl.u32 %v285, 16
        %v379 = vrot.slane %v377, 4
        %v380 = vor.u32 %v379, %v375
        %v381 = vrot.slane %v380, 4
        %v383 = vshll.u32 %v306, 16
        %v385 = vrot.slane %v383, 5
        %v386 = vsel %vm314, %v381, %v385
        %v388 = vshrl.u32 %v286, 16
        %v390 = vrot.slane %v388, 4
        %v391 = vshll.u32 %v286, 16
        %v393 = vrot.slane %v391, 5
        %v394 = vor.u32 %v390, %v393
        %v395 = vrot.slane %v394, 4
        %v397 = vshll.u32 %v287, 16
        %v399 = vrot.slane %v397, 5
        %v400 = vsel %vm314, %v395, %v399
        %v401 = vshrl.u32 %v287, 16
        %v403 = vrot.slane %v401, 4
        %v404 = vor.u32 %v403, %v399
        %v405 = vrot.slane %v404, 4
        %v407 = vshll.u32 %v307, 16
        %v409 = vrot.slane %v407, 5
        %v410 = vsel %vm314, %v405, %v409
        %v412 = vshrl.u32 %v288, 16
        %v414 = vrot.slane %v412, 4
        %v415 = vshll.u32 %v288, 16
        %v417 = vrot.slane %v415, 5
        %v418 = vor.u32 %v414, %v417
        %v419 = vrot.slane %v418, 4
        %v421 = vshll.u32 %v289, 16
        %v423 = vrot.slane %v421, 5
        %v424 = vsel %vm314, %v419, %v423
        %v425 = vshrl.u32 %v289, 16
        %v427 = vrot.slane %v425, 4
        %v428 = vor.u32 %v427, %v423
        %v429 = vrot.slane %v428, 4
        %v431 = vshll.u32 %v308, 16
        %v433 = vrot.slane %v431, 5
        %v434 = vsel %vm314, %v429, %v433
        %v436 = vshrl.u32 %v290, 16
        %v438 = vrot.slane %v436, 4
        %v439 = vshll.u32 %v290, 16
        %v441 = vrot.slane %v439, 5
        %v442 = vor.u32 %v438, %v441
        %v443 = vrot.slane %v442, 4
        %v445 = vshll.u32 %v291, 16
        %v447 = vrot.slane %v445, 5
        %v448 = vsel %vm314, %v443, %v447
        %v449 = vshrl.u32 %v291, 16
        %v451 = vrot.slane %v449, 4
        %v452 = vor.u32 %v451, %v447
        %v453 = vrot.slane %v452, 4
        %v455 = vshll.u32 %v309, 16
        %v457 = vrot.slane %v455, 5
        %v458 = vsel %vm314, %v453, %v457
        %v460 = vshrl.u32 %v292, 16
        %v462 = vrot.slane %v460, 4
        %v463 = vshll.u32 %v292, 16
        %v465 = vrot.slane %v463, 5
        %v466 = vor.u32 %v462, %v465
        %v467 = vrot.slane %v466, 4
        %v469 = vshll.u32 %v293, 16
        %v471 = vrot.slane %v469, 5
        %v472 = vsel %vm314, %v467, %v471
        %v473 = vshrl.u32 %v293, 16
        %v475 = vrot.slane %v473, 4
        %v476 = vor.u32 %v475, %v471
        %v477 = vrot.slane %v476, 4
        %v479 = vshll.u32 %v310, 16
        %v481 = vrot.slane %v479, 5
        %v482 = vsel %vm314, %v477, %v481
        %v484 = vshrl.u32 %v294, 16
        %v486 = vrot.slane %v484, 4
        %v487 = vshll.u32 %v294, 16
        %v489 = vrot.slane %v487, 5
        %v490 = vor.u32 %v486, %v489
        %v491 = vrot.slane %v490, 4
        %v493 = vshll.u32 %v295, 16
        %v495 = vrot.slane %v493, 5
        %v496 = vsel %vm314, %v491, %v495
        %v497 = vshrl.u32 %v295, 16
        %v499 = vrot.slane %v497, 4
        %v500 = vor.u32 %v499, %v495
        %v501 = vrot.slane %v500, 4
        %v503 = vshll.u32 %v311, 16
        %v505 = vrot.slane %v503, 5
        %v506 = vsel %vm314, %v501, %v505
        %s507 = scalar_lea.vmem %s271, 32
        %v508 = vld [vmem:[%s507] sm:$0xf]
        %v509 = vld [vmem:[%s507 + $0x4] sm:$0xf]
        %v510 = vld [vmem:[%s507 + $0x8] sm:$0xf]
        %v511 = vld [vmem:[%s507 + $0xc] sm:$0xf]
        %v512 = vld [vmem:[%s507 + $0x10] sm:$0xf]
        %v513 = vld [vmem:[%s507 + $0x14] sm:$0xf]
        %v514 = vld [vmem:[%s507 + $0x18] sm:$0xf]
        %v515 = vld [vmem:[%s507 + $0x1c] sm:$0xf]
        %v516 = vunpack.c.l.b16 %v328
        %v517 = vunpack.c.l.b16 %v338
        %v518 = vunpack.c.l.b16 %v352
        %v519 = vunpack.c.l.b16 %v362
        %v520 = vunpack.c.l.b16 %v376
        %v521 = vunpack.c.l.b16 %v386
        %v522 = vunpack.c.l.b16 %v400
        %v523 = vunpack.c.l.b16 %v410
        %v524 = vunpack.c.l.b16 %v424
        %v525 = vunpack.c.l.b16 %v434
        %v526 = vunpack.c.l.b16 %v448
        %v527 = vunpack.c.l.b16 %v458
        %v528 = vunpack.c.l.b16 %v472
        %v529 = vunpack.c.l.b16 %v482
        %v530 = vunpack.c.l.b16 %v496
        %v531 = vunpack.c.l.b16 %v506
        %v532 = vpack.c.b16 %v517, %v516
        %v533 = vpack.c.b16 %v519, %v518
        %v534 = vpack.c.b16 %v521, %v520
        %v535 = vpack.c.b16 %v523, %v522
        %v536 = vpack.c.b16 %v525, %v524
        %v537 = vpack.c.b16 %v527, %v526
        %v538 = vpack.c.b16 %v529, %v528
        %v539 = vpack.c.b16 %v531, %v530
        %v548 = vunpack.c.l.b16 %v508
        %v549 = vunpack.c.l.b16 %v509
        %v550 = vunpack.c.l.b16 %v510
        %v551 = vunpack.c.l.b16 %v511
        %v552 = vunpack.c.l.b16 %v512
        %v553 = vunpack.c.l.b16 %v513
        %v554 = vunpack.c.l.b16 %v514
        %v555 = vunpack.c.l.b16 %v515
        %v556 = vpack.c.b16 %v549, %v548
        %v557 = vpack.c.b16 %v551, %v550
        %v558 = vpack.c.b16 %v553, %v552
        %v559 = vpack.c.b16 %v555, %v554
        %vm564 = vcmask 523264
        %v566 = vsel %vm564, %v532, 0
        %v569 = vsel %vm564, %v533, 0
        %v572 = vsel %vm564, %v534, 0
        %v575 = vsel %vm564, %v535, 0
        %v578 = vsel %vm564, %v536, 0
        %v581 = vsel %vm564, %v537, 0
        %v584 = vsel %vm564, %v538, 0
        %v587 = vsel %vm564, %v539, 0
        %589 = vmatprep.subr.bf16.mxu0 0
        %590 = vmatpush1.bf16.msra.mxu0 %v556
        %591 = vmatprep.subr.bf16.mxu0 0
        %592 = vmatpush1.bf16.msra.mxu0 %v557
        %593 = vmatprep.subr.bf16.mxu0 0
        %594 = vmatpush1.bf16.msra.mxu0 %v558
        %595 = vmatprep.subr.bf16.mxu0 0
        %596 = vmatpush1.bf16.msra.mxu0 %v559
        %597 = vmatprep.subr.bf16.mxu0 0
        %598 = vmatpush1.bf16.msra.mxu0 0
        %599 = vmatprep.subr.bf16.mxu0 0
        %600 = vmatpush1.bf16.msra.mxu0 0
        %601 = vmatprep.subr.bf16.mxu0 0
        %602 = vmatpush1.bf16.msra.mxu0 0
        %603 = vmatprep.subr.bf16.mxu0 0
        %604 = vmatpush1.bf16.msra.mxu0 0
        %605 = vmatprep.subr.bf16.mxu0 0
        %606 = vmatpush1.bf16.msra.mxu0 0
        %607 = vmatprep.subr.bf16.mxu0 0
        %608 = vmatpush1.bf16.msra.mxu0 0
        %609 = vmatprep.subr.bf16.mxu0 0
        %610 = vmatpush1.bf16.msra.mxu0 0
        %611 = vmatprep.subr.bf16.mxu0 0
        %612 = vmatpush1.bf16.msra.mxu0 0
        %613 = vmatprep.subr.bf16.mxu0 0
        %614 = vmatpush1.bf16.msra.mxu0 0
        %615 = vmatprep.subr.bf16.mxu0 0
        %616 = vmatpush1.bf16.msra.mxu0 0
        %617 = vmatprep.subr.bf16.mxu0 0
        %618 = vmatpush1.bf16.msra.mxu0 0
        %619 = vmatprep.subr.bf16.mxu0 0
        %620 = vmatpush1.bf16.msra.mxu0 0
        %621 = vmatprep.mubr.bf16.mxu0 0
        %622 = vmatmul.mubr.bf16.gmra.mrb[0].mxu0 %v566
        %v623 = vpop.f32.mrb[0].mxu0
        %v624 = vadd.f32 0.0, %v623
        %v625 = vpop.f32.mrb[0].mxu0
        %v626 = vpop.f32.mrb[0].mxu0
        %v627 = vadd.f32 0.0, %v626
        %v628 = vpop.f32.mrb[0].mxu0
        %629 = vmatprep.mubr.bf16.mxu0 0
        %630 = vmatmul.mubr.bf16.gmra.mrb[0].mxu0 %v569
        %v631 = vpop.f32.mrb[0].mxu0
        %v632 = vadd.f32 0.0, %v631
        %v633 = vpop.f32.mrb[0].mxu0
        %v634 = vpop.f32.mrb[0].mxu0
        %v635 = vadd.f32 0.0, %v634
        %v636 = vpop.f32.mrb[0].mxu0
        %637 = vmatprep.mubr.bf16.mxu0 0
        %638 = vmatmul.mubr.bf16.gmra.mrb[0].mxu0 %v572
        %v639 = vpop.f32.mrb[0].mxu0
        %v640 = vadd.f32 0.0, %v639
        %v641 = vpop.f32.mrb[0].mxu0
        %v642 = vpop.f32.mrb[0].mxu0
        %v643 = vadd.f32 0.0, %v642
        %v644 = vpop.f32.mrb[0].mxu0
        %645 = vmatprep.mubr.bf16.mxu0 0
        %646 = vmatmul.mubr.bf16.gmra.mrb[0].mxu0 %v575
        %v647 = vpop.f32.mrb[0].mxu0
        %v648 = vadd.f32 0.0, %v647
        %v649 = vpop.f32.mrb[0].mxu0
        %v650 = vpop.f32.mrb[0].mxu0
        %v651 = vadd.f32 0.0, %v650
        %v652 = vpop.f32.mrb[0].mxu0
        %653 = vmatprep.mubr.bf16.mxu0 0
        %654 = vmatmul.mubr.bf16.gmra.mrb[0].mxu0 %v578
        %v655 = vpop.f32.mrb[0].mxu0
        %v656 = vadd.f32 0.0, %v655
        %v657 = vpop.f32.mrb[0].mxu0
        %v658 = vpop.f32.mrb[0].mxu0
        %v659 = vadd.f32 0.0, %v658
        %v660 = vpop.f32.mrb[0].mxu0
        %661 = vmatprep.mubr.bf16.mxu0 0
        %662 = vmatmul.mubr.bf16.gmra.mrb[0].mxu0 %v581
        %v663 = vpop.f32.mrb[0].mxu0
        %v664 = vadd.f32 0.0, %v663
        %v665 = vpop.f32.mrb[0].mxu0
        %v666 = vpop.f32.mrb[0].mxu0
        %v667 = vadd.f32 0.0, %v666
        %v668 = vpop.f32.mrb[0].mxu0
        %669 = vmatprep.mubr.bf16.mxu0 0
        %670 = vmatmul.mubr.bf16.gmra.mrb[0].mxu0 %v584
        %v671 = vpop.f32.mrb[0].mxu0
        %v672 = vadd.f32 0.0, %v671
        %v673 = vpop.f32.mrb[0].mxu0
        %v674 = vpop.f32.mrb[0].mxu0
        %v675 = vadd.f32 0.0, %v674
        %v676 = vpop.f32.mrb[0].mxu0
        %677 = vmatprep.mubr.bf16.mxu0 0
        %678 = vmatmul.mubr.bf16.gmra.mrb[0].mxu0 %v587
        %v679 = vpop.f32.mrb[0].mxu0
        %v680 = vadd.f32 0.0, %v679
        %v681 = vpop.f32.mrb[0].mxu0
        %v682 = vpop.f32.mrb[0].mxu0
        %v683 = vadd.f32 0.0, %v682
        %v684 = vpop.f32.mrb[0].mxu0
        %685 = vdwg.mxu0
        %v702 = vunpack.c.l.b16 %v280
        %v703 = vunpack.c.l.b16 %v281
        %v704 = vunpack.c.l.b16 %v282
        %v705 = vunpack.c.l.b16 %v283
        %v706 = vunpack.c.l.b16 %v284
        %v707 = vunpack.c.l.b16 %v285
        %v708 = vunpack.c.l.b16 %v286
        %v709 = vunpack.c.l.b16 %v287
        %v710 = vunpack.c.l.b16 %v288
        %v711 = vunpack.c.l.b16 %v289
        %v712 = vunpack.c.l.b16 %v290
        %v713 = vunpack.c.l.b16 %v291
        %v714 = vunpack.c.l.b16 %v292
        %v715 = vunpack.c.l.b16 %v293
        %v716 = vunpack.c.l.b16 %v294
        %v717 = vunpack.c.l.b16 %v295
        %v718 = vpack.c.b16 %v703, %v702
        %v719 = vpack.c.b16 %v705, %v704
        %v720 = vpack.c.b16 %v707, %v706
        %v721 = vpack.c.b16 %v709, %v708
        %v722 = vpack.c.b16 %v711, %v710
        %v723 = vpack.c.b16 %v713, %v712
        %v724 = vpack.c.b16 %v715, %v714
        %v725 = vpack.c.b16 %v717, %v716
        %v734 = vunpack.c.l.b16 %v296
        %v735 = vunpack.c.l.b16 %v297
        %v736 = vunpack.c.l.b16 %v298
        %v737 = vunpack.c.l.b16 %v299
        %v738 = vunpack.c.l.b16 %v300
        %v739 = vunpack.c.l.b16 %v301
        %v740 = vunpack.c.l.b16 %v302
        %v741 = vunpack.c.l.b16 %v303
        %v742 = vpack.c.b16 %v735, %v734
        %v743 = vpack.c.b16 %v737, %v736
        %v744 = vpack.c.b16 %v739, %v738
        %v745 = vpack.c.b16 %v741, %v740
        %v751 = vsel %vm564, %v718, 0
        %v754 = vsel %vm564, %v719, 0
        %v757 = vsel %vm564, %v720, 0
        %v760 = vsel %vm564, %v721, 0
        %v763 = vsel %vm564, %v722, 0
        %v766 = vsel %vm564, %v723, 0
        %v769 = vsel %vm564, %v724, 0
        %v772 = vsel %vm564, %v725, 0
        %774 = vmatprep.subr.bf16.mxu0 0
        %775 = vmatpush1.bf16.msra.mxu0 %v742
        %776 = vmatprep.subr.bf16.mxu0 0
        %777 = vmatpush1.bf16.msra.mxu0 %v743
        %778 = vmatprep.subr.bf16.mxu0 0
        %779 = vmatpush1.bf16.msra.mxu0 %v744
        %780 = vmatprep.subr.bf16.mxu0 0
        %781 = vmatpush1.bf16.msra.mxu0 %v745
        %782 = vmatprep.subr.bf16.mxu0 0
        %783 = vmatpush1.bf16.msra.mxu0 0
        %784 = vmatprep.subr.bf16.mxu0 0
        %785 = vmatpush1.bf16.msra.mxu0 0
        %786 = vmatprep.subr.bf16.mxu0 0
        %787 = vmatpush1.bf16.msra.mxu0 0
        %788 = vmatprep.subr.bf16.mxu0 0
        %789 = vmatpush1.bf16.msra.mxu0 0
        %790 = vmatprep.subr.bf16.mxu0 0
        %791 = vmatpush1.bf16.msra.mxu0 0
        %792 = vmatprep.subr.bf16.mxu0 0
        %793 = vmatpush1.bf16.msra.mxu0 0
        %794 = vmatprep.subr.bf16.mxu0 0
        %795 = vmatpush1.bf16.msra.mxu0 0
        %796 = vmatprep.subr.bf16.mxu0 0
        %797 = vmatpush1.bf16.msra.mxu0 0
        %798 = vmatprep.subr.bf16.mxu0 0
        %799 = vmatpush1.bf16.msra.mxu0 0
        %800 = vmatprep.subr.bf16.mxu0 0
        %801 = vmatpush1.bf16.msra.mxu0 0
        %802 = vmatprep.subr.bf16.mxu0 0
        %803 = vmatpush1.bf16.msra.mxu0 0
        %804 = vmatprep.subr.bf16.mxu0 0
        %805 = vmatpush1.bf16.msra.mxu0 0
        %806 = vmatprep.mubr.bf16.mxu0 0
        %807 = vmatmul.mubr.bf16.gmra.mrb[0].mxu0 %v751
        %v808 = vpop.f32.mrb[0].mxu0
        %v809 = vadd.f32 %v624, %v808
        %v810 = vpop.f32.mrb[0].mxu0
        %v811 = vpop.f32.mrb[0].mxu0
        %v812 = vadd.f32 %v627, %v811
        %v813 = vpop.f32.mrb[0].mxu0
        %814 = vmatprep.mubr.bf16.mxu0 0
        %815 = vmatmul.mubr.bf16.gmra.mrb[0].mxu0 %v754
        %v816 = vpop.f32.mrb[0].mxu0
        %v817 = vadd.f32 %v632, %v816
        %v818 = vpop.f32.mrb[0].mxu0
        %v819 = vpop.f32.mrb[0].mxu0
        %v820 = vadd.f32 %v635, %v819
        %v821 = vpop.f32.mrb[0].mxu0
        %822 = vmatprep.mubr.bf16.mxu0 0
        %823 = vmatmul.mubr.bf16.gmra.mrb[0].mxu0 %v757
        %v824 = vpop.f32.mrb[0].mxu0
        %v825 = vadd.f32 %v640, %v824
        %v826 = vpop.f32.mrb[0].mxu0
        %v827 = vpop.f32.mrb[0].mxu0
        %v828 = vadd.f32 %v643, %v827
        %v829 = vpop.f32.mrb[0].mxu0
        %830 = vmatprep.mubr.bf16.mxu0 0
        %831 = vmatmul.mubr.bf16.gmra.mrb[0].mxu0 %v760
        %v832 = vpop.f32.mrb[0].mxu0
        %v833 = vadd.f32 %v648, %v832
        %v834 = vpop.f32.mrb[0].mxu0
        %v835 = vpop.f32.mrb[0].mxu0
        %v836 = vadd.f32 %v651, %v835
        %v837 = vpop.f32.mrb[0].mxu0
        %838 = vmatprep.mubr.bf16.mxu0 0
        %839 = vmatmul.mubr.bf16.gmra.mrb[0].mxu0 %v763
        %v840 = vpop.f32.mrb[0].mxu0
        %v841 = vadd.f32 %v656, %v840
        %v842 = vpop.f32.mrb[0].mxu0
        %v843 = vpop.f32.mrb[0].mxu0
        %v844 = vadd.f32 %v659, %v843
        %v845 = vpop.f32.mrb[0].mxu0
        %846 = vmatprep.mubr.bf16.mxu0 0
        %847 = vmatmul.mubr.bf16.gmra.mrb[0].mxu0 %v766
        %v848 = vpop.f32.mrb[0].mxu0
        %v849 = vadd.f32 %v664, %v848
        %v850 = vpop.f32.mrb[0].mxu0
        %v851 = vpop.f32.mrb[0].mxu0
        %v852 = vadd.f32 %v667, %v851
        %v853 = vpop.f32.mrb[0].mxu0
        %854 = vmatprep.mubr.bf16.mxu0 0
        %855 = vmatmul.mubr.bf16.gmra.mrb[0].mxu0 %v769
        %v856 = vpop.f32.mrb[0].mxu0
        %v857 = vadd.f32 %v672, %v856
        %v858 = vpop.f32.mrb[0].mxu0
        %v859 = vpop.f32.mrb[0].mxu0
        %v860 = vadd.f32 %v675, %v859
        %v861 = vpop.f32.mrb[0].mxu0
        %862 = vmatprep.mubr.bf16.mxu0 0
        %863 = vmatmul.mubr.bf16.gmra.mrb[0].mxu0 %v772
        %v864 = vpop.f32.mrb[0].mxu0
        %v865 = vadd.f32 %v680, %v864
        %v866 = vpop.f32.mrb[0].mxu0
        %v867 = vpop.f32.mrb[0].mxu0
        %v868 = vadd.f32 %v683, %v867
        %v869 = vpop.f32.mrb[0].mxu0
        %870 = vdwg.mxu0
        %v871 = vld [vmem:[%s265] sm:$0xe]
        %v872 = vld [vmem:[%s265 + $0xc] sm:$0xe]
        %v873 = vld [vmem:[%s265 + $0x18] sm:$0xe]
        %v874 = vld [vmem:[%s265 + $0x24] sm:$0xe]
        %v875 = vld [vmem:[%s265 + $0x30] sm:$0xe]
        %v876 = vld [vmem:[%s265 + $0x3c] sm:$0xe]
        %v877 = vld [vmem:[%s265 + $0x48] sm:$0xe]
        %v878 = vld [vmem:[%s265 + $0x54] sm:$0xe]
        %vm895 = vcmask 1042432
        %vm896 = vcmask 1046532
        %vm897 = vmor %vm895, %vm896
        %v898 = vrot.slane %v871, 5
        %v899 = vrot.slane %v898, 4
        %v900 = vrot.slane %v281, 5
        %v901 = vsel %vm897, %v899, %v900
        %v902 = vrot.slane %v900, 4
        %v903 = vrot.slane %v304, 5
        %v904 = vsel %vm897, %v902, %v903
        %v905 = vrot.slane %v872, 5
        %v906 = vrot.slane %v905, 4
        %v907 = vrot.slane %v283, 5
        %v908 = vsel %vm897, %v906, %v907
        %v909 = vrot.slane %v907, 4
        %v910 = vrot.slane %v305, 5
        %v911 = vsel %vm897, %v909, %v910
        %v912 = vrot.slane %v873, 5
        %v913 = vrot.slane %v912, 4
        %v914 = vrot.slane %v285, 5
        %v915 = vsel %vm897, %v913, %v914
        %v916 = vrot.slane %v914, 4
        %v917 = vrot.slane %v306, 5
        %v918 = vsel %vm897, %v916, %v917
        %v919 = vrot.slane %v874, 5
        %v920 = vrot.slane %v919, 4
        %v921 = vrot.slane %v287, 5
        %v922 = vsel %vm897, %v920, %v921
        %v923 = vrot.slane %v921, 4
        %v924 = vrot.slane %v307, 5
        %v925 = vsel %vm897, %v923, %v924
        %v926 = vrot.slane %v875, 5
        %v927 = vrot.slane %v926, 4
        %v928 = vrot.slane %v289, 5
        %v929 = vsel %vm897, %v927, %v928
        %v930 = vrot.slane %v928, 4
        %v931 = vrot.slane %v308, 5
        %v932 = vsel %vm897, %v930, %v931
        %v933 = vrot.slane %v876, 5
        %v934 = vrot.slane %v933, 4
        %v935 = vrot.slane %v291, 5
        %v936 = vsel %vm897, %v934, %v935
        %v937 = vrot.slane %v935, 4
        %v938 = vrot.slane %v309, 5
        %v939 = vsel %vm897, %v937, %v938
        %v940 = vrot.slane %v877, 5
        %v941 = vrot.slane %v940, 4
        %v942 = vrot.slane %v293, 5
        %v943 = vsel %vm897, %v941, %v942
        %v944 = vrot.slane %v942, 4
        %v945 = vrot.slane %v310, 5
        %v946 = vsel %vm897, %v944, %v945
        %v947 = vrot.slane %v878, 5
        %v948 = vrot.slane %v947, 4
        %v949 = vrot.slane %v295, 5
        %v950 = vsel %vm897, %v948, %v949
        %v951 = vrot.slane %v949, 4
        %v952 = vrot.slane %v311, 5
        %v953 = vsel %vm897, %v951, %v952
        %s954 = scalar_lea.vmem %s271, 64
        %v955 = vld [vmem:[%s954] sm:$0xf]
        %v956 = vld [vmem:[%s954 + $0x4] sm:$0xf]
        %v957 = vld [vmem:[%s954 + $0x8] sm:$0xf]
        %v958 = vld [vmem:[%s954 + $0xc] sm:$0xf]
        %v959 = vld [vmem:[%s954 + $0x10] sm:$0xf]
        %v960 = vld [vmem:[%s954 + $0x14] sm:$0xf]
        %v961 = vld [vmem:[%s954 + $0x18] sm:$0xf]
        %v962 = vld [vmem:[%s954 + $0x1c] sm:$0xf]
        %v963 = vunpack.c.l.b16 %v901
        %v964 = vunpack.c.l.b16 %v904
        %v965 = vunpack.c.l.b16 %v908
        %v966 = vunpack.c.l.b16 %v911
        %v967 = vunpack.c.l.b16 %v915
        %v968 = vunpack.c.l.b16 %v918
        %v969 = vunpack.c.l.b16 %v922
        %v970 = vunpack.c.l.b16 %v925
        %v971 = vunpack.c.l.b16 %v929
        %v972 = vunpack.c.l.b16 %v932
        %v973 = vunpack.c.l.b16 %v936
        %v974 = vunpack.c.l.b16 %v939
        %v975 = vunpack.c.l.b16 %v943
        %v976 = vunpack.c.l.b16 %v946
        %v977 = vunpack.c.l.b16 %v950
        %v978 = vunpack.c.l.b16 %v953
        %v979 = vpack.c.b16 %v964, %v963
        %v980 = vpack.c.b16 %v966, %v965
        %v981 = vpack.c.b16 %v968, %v967
        %v982 = vpack.c.b16 %v970, %v969
        %v983 = vpack.c.b16 %v972, %v971
        %v984 = vpack.c.b16 %v974, %v973
        %v985 = vpack.c.b16 %v976, %v975
        %v986 = vpack.c.b16 %v978, %v977
        %v995 = vunpack.c.l.b16 %v955
        %v996 = vunpack.c.l.b16 %v956
        %v997 = vunpack.c.l.b16 %v957
        %v998 = vunpack.c.l.b16 %v958
        %v999 = vunpack.c.l.b16 %v959
        %v1000 = vunpack.c.l.b16 %v960
        %v1001 = vunpack.c.l.b16 %v961
        %v1002 = vunpack.c.l.b16 %v962
        %v1003 = vpack.c.b16 %v996, %v995
        %v1004 = vpack.c.b16 %v998, %v997
        %v1005 = vpack.c.b16 %v1000, %v999
        %v1006 = vpack.c.b16 %v1002, %v1001
        %v1012 = vsel %vm564, %v979, 0
        %v1015 = vsel %vm564, %v980, 0
        %v1018 = vsel %vm564, %v981, 0
        %v1021 = vsel %vm564, %v982, 0
        %v1024 = vsel %vm564, %v983, 0
        %v1027 = vsel %vm564, %v984, 0
        %v1030 = vsel %vm564, %v985, 0
        %v1033 = vsel %vm564, %v986, 0
        %1035 = vmatprep.subr.bf16.mxu0 0
        %1036 = vmatpush1.bf16.msra.mxu0 %v1003
        %1037 = vmatprep.subr.bf16.mxu0 0
        %1038 = vmatpush1.bf16.msra.mxu0 %v1004
        %1039 = vmatprep.subr.bf16.mxu0 0
        %1040 = vmatpush1.bf16.msra.mxu0 %v1005
        %1041 = vmatprep.subr.bf16.mxu0 0
        %1042 = vmatpush1.bf16.msra.mxu0 %v1006
        %1043 = vmatprep.subr.bf16.mxu0 0
        %1044 = vmatpush1.bf16.msra.mxu0 0
        %1045 = vmatprep.subr.bf16.mxu0 0
        %1046 = vmatpush1.bf16.msra.mxu0 0
        %1047 = vmatprep.subr.bf16.mxu0 0
        %1048 = vmatpush1.bf16.msra.mxu0 0
        %1049 = vmatprep.subr.bf16.mxu0 0
        %1050 = vmatpush1.bf16.msra.mxu0 0
        %1051 = vmatprep.subr.bf16.mxu0 0
        %1052 = vmatpush1.bf16.msra.mxu0 0
        %1053 = vmatprep.subr.bf16.mxu0 0
        %1054 = vmatpush1.bf16.msra.mxu0 0
        %1055 = vmatprep.subr.bf16.mxu0 0
        %1056 = vmatpush1.bf16.msra.mxu0 0
        %1057 = vmatprep.subr.bf16.mxu0 0
        %1058 = vmatpush1.bf16.msra.mxu0 0
        %1059 = vmatprep.subr.bf16.mxu0 0
        %1060 = vmatpush1.bf16.msra.mxu0 0
        %1061 = vmatprep.subr.bf16.mxu0 0
        %1062 = vmatpush1.bf16.msra.mxu0 0
        %1063 = vmatprep.subr.bf16.mxu0 0
        %1064 = vmatpush1.bf16.msra.mxu0 0
        %1065 = vmatprep.subr.bf16.mxu0 0
        %1066 = vmatpush1.bf16.msra.mxu0 0
        %1067 = vmatprep.mubr.bf16.mxu0 0
        %1068 = vmatmul.mubr.bf16.gmra.mrb[0].mxu0 %v1012
        %v1069 = vpop.f32.mrb[0].mxu0
        %v1070 = vadd.f32 0.0, %v1069
        %v1071 = vpop.f32.mrb[0].mxu0
        %v1072 = vpop.f32.mrb[0].mxu0
        %v1073 = vadd.f32 0.0, %v1072
        %v1074 = vpop.f32.mrb[0].mxu0
        %1075 = vmatprep.mubr.bf16.mxu0 0
        %1076 = vmatmul.mubr.bf16.gmra.mrb[0].mxu0 %v1015
        %v1077 = vpop.f32.mrb[0].mxu0
        %v1078 = vadd.f32 0.0, %v1077
        %v1079 = vpop.f32.mrb[0].mxu0
        %v1080 = vpop.f32.mrb[0].mxu0
        %v1081 = vadd.f32 0.0, %v1080
        %v1082 = vpop.f32.mrb[0].mxu0
        %1083 = vmatprep.mubr.bf16.mxu0 0
        %1084 = vmatmul.mubr.bf16.gmra.mrb[0].mxu0 %v1018
        %v1085 = vpop.f32.mrb[0].mxu0
        %v1086 = vadd.f32 0.0, %v1085
        %v1087 = vpop.f32.mrb[0].mxu0
        %v1088 = vpop.f32.mrb[0].mxu0
        %v1089 = vadd.f32 0.0, %v1088
        %v1090 = vpop.f32.mrb[0].mxu0
        %1091 = vmatprep.mubr.bf16.mxu0 0
        %1092 = vmatmul.mubr.bf16.gmra.mrb[0].mxu0 %v1021
        %v1093 = vpop.f32.mrb[0].mxu0
        %v1094 = vadd.f32 0.0, %v1093
        %v1095 = vpop.f32.mrb[0].mxu0
        %v1096 = vpop.f32.mrb[0].mxu0
        %v1097 = vadd.f32 0.0, %v1096
        %v1098 = vpop.f32.mrb[0].mxu0
        %1099 = vmatprep.mubr.bf16.mxu0 0
        %1100 = vmatmul.mubr.bf16.gmra.mrb[0].mxu0 %v1024
        %v1101 = vpop.f32.mrb[0].mxu0
        %v1102 = vadd.f32 0.0, %v1101
        %v1103 = vpop.f32.mrb[0].mxu0
        %v1104 = vpop.f32.mrb[0].mxu0
        %v1105 = vadd.f32 0.0, %v1104
        %v1106 = vpop.f32.mrb[0].mxu0
        %1107 = vmatprep.mubr.bf16.mxu0 0
        %1108 = vmatmul.mubr.bf16.gmra.mrb[0].mxu0 %v1027
        %v1109 = vpop.f32.mrb[0].mxu0
        %v1110 = vadd.f32 0.0, %v1109
        %v1111 = vpop.f32.mrb[0].mxu0
        %v1112 = vpop.f32.mrb[0].mxu0
        %v1113 = vadd.f32 0.0, %v1112
        %v1114 = vpop.f32.mrb[0].mxu0
        %1115 = vmatprep.mubr.bf16.mxu0 0
        %1116 = vmatmul.mubr.bf16.gmra.mrb[0].mxu0 %v1030
        %v1117 = vpop.f32.mrb[0].mxu0
        %v1118 = vadd.f32 0.0, %v1117
        %v1119 = vpop.f32.mrb[0].mxu0
        %v1120 = vpop.f32.mrb[0].mxu0
        %v1121 = vadd.f32 0.0, %v1120
        %v1122 = vpop.f32.mrb[0].mxu0
        %1123 = vmatprep.mubr.bf16.mxu0 0
        %1124 = vmatmul.mubr.bf16.gmra.mrb[0].mxu0 %v1033
        %v1125 = vpop.f32.mrb[0].mxu0
        %v1126 = vadd.f32 0.0, %v1125
        %v1127 = vpop.f32.mrb[0].mxu0
        %v1128 = vpop.f32.mrb[0].mxu0
        %v1129 = vadd.f32 0.0, %v1128
        %v1130 = vpop.f32.mrb[0].mxu0
        %1131 = vdwg.mxu0
        %v1132 = vadd.f32 %v809, %v1070
        %v1133 = vadd.f32 %v812, %v1073
        %v1134 = vadd.f32 %v817, %v1078
        %v1135 = vadd.f32 %v820, %v1081
        %v1136 = vadd.f32 %v825, %v1086
        %v1137 = vadd.f32 %v828, %v1089
        %v1138 = vadd.f32 %v833, %v1094
        %v1139 = vadd.f32 %v836, %v1097
        %v1140 = vadd.f32 %v841, %v1102
        %v1141 = vadd.f32 %v844, %v1105
        %v1142 = vadd.f32 %v849, %v1110
        %v1143 = vadd.f32 %v852, %v1113
        %v1144 = vadd.f32 %v857, %v1118
        %v1145 = vadd.f32 %v860, %v1121
        %v1146 = vadd.f32 %v865, %v1126
        %v1147 = vadd.f32 %v868, %v1129
        %s1148 = scalar_lea.vmem %s265, 12
        %v1149 = vld [vmem:[%s1148] sm:$0xf]
        %v1150 = vld [vmem:[%s1148 + $0x4] sm:$0xf]
        %v1151 = vld [vmem:[%s1148 + $0xc] sm:$0xf]
        %v1152 = vld [vmem:[%s1148 + $0x10] sm:$0xf]
        %v1153 = vld [vmem:[%s1148 + $0x18] sm:$0xf]
        %v1154 = vld [vmem:[%s1148 + $0x1c] sm:$0xf]
        %v1155 = vld [vmem:[%s1148 + $0x24] sm:$0xf]
        %v1156 = vld [vmem:[%s1148 + $0x28] sm:$0xf]
        %v1157 = vld [vmem:[%s1148 + $0x30] sm:$0xf]
        %v1158 = vld [vmem:[%s1148 + $0x34] sm:$0xf]
        %v1159 = vld [vmem:[%s1148 + $0x3c] sm:$0xf]
        %v1160 = vld [vmem:[%s1148 + $0x40] sm:$0xf]
        %v1161 = vld [vmem:[%s1148 + $0x48] sm:$0xf]
        %v1162 = vld [vmem:[%s1148 + $0x4c] sm:$0xf]
        %v1163 = vld [vmem:[%s1148 + $0x54] sm:$0xf]
        %v1164 = vld [vmem:[%s1148 + $0x58] sm:$0xf]
        %s1165 = scalar_lea.vmem %s271, 96
        %v1166 = vld [vmem:[%s1165] sm:$0xf]
        %v1167 = vld [vmem:[%s1165 + $0x4] sm:$0xf]
        %v1168 = vld [vmem:[%s1165 + $0x8] sm:$0xf]
        %v1169 = vld [vmem:[%s1165 + $0xc] sm:$0xf]
        %v1170 = vld [vmem:[%s1165 + $0x10] sm:$0xf]
        %v1171 = vld [vmem:[%s1165 + $0x14] sm:$0xf]
        %v1172 = vld [vmem:[%s1165 + $0x18] sm:$0xf]
        %v1173 = vld [vmem:[%s1165 + $0x1c] sm:$0xf]
        %v1190 = vunpack.c.l.b16 %v1149
        %v1191 = vunpack.c.l.b16 %v1150
        %v1192 = vunpack.c.l.b16 %v1151
        %v1193 = vunpack.c.l.b16 %v1152
        %v1194 = vunpack.c.l.b16 %v1153
        %v1195 = vunpack.c.l.b16 %v1154
        %v1196 = vunpack.c.l.b16 %v1155
        %v1197 = vunpack.c.l.b16 %v1156
        %v1198 = vunpack.c.l.b16 %v1157
        %v1199 = vunpack.c.l.b16 %v1158
        %v1200 = vunpack.c.l.b16 %v1159
        %v1201 = vunpack.c.l.b16 %v1160
        %v1202 = vunpack.c.l.b16 %v1161
        %v1203 = vunpack.c.l.b16 %v1162
        %v1204 = vunpack.c.l.b16 %v1163
        %v1205 = vunpack.c.l.b16 %v1164
        %v1206 = vpack.c.b16 %v1191, %v1190
        %v1207 = vpack.c.b16 %v1193, %v1192
        %v1208 = vpack.c.b16 %v1195, %v1194
        %v1209 = vpack.c.b16 %v1197, %v1196
        %v1210 = vpack.c.b16 %v1199, %v1198
        %v1211 = vpack.c.b16 %v1201, %v1200
        %v1212 = vpack.c.b16 %v1203, %v1202
        %v1213 = vpack.c.b16 %v1205, %v1204
        %v1222 = vunpack.c.l.b16 %v1166
        %v1223 = vunpack.c.l.b16 %v1167
        %v1224 = vunpack.c.l.b16 %v1168
        %v1225 = vunpack.c.l.b16 %v1169
        %v1226 = vunpack.c.l.b16 %v1170
        %v1227 = vunpack.c.l.b16 %v1171
        %v1228 = vunpack.c.l.b16 %v1172
        %v1229 = vunpack.c.l.b16 %v1173
        %v1230 = vpack.c.b16 %v1223, %v1222
        %v1231 = vpack.c.b16 %v1225, %v1224
        %v1232 = vpack.c.b16 %v1227, %v1226
        %v1233 = vpack.c.b16 %v1229, %v1228
        %v1239 = vsel %vm564, %v1206, 0
        %v1242 = vsel %vm564, %v1207, 0
        %v1245 = vsel %vm564, %v1208, 0
        %v1248 = vsel %vm564, %v1209, 0
        %v1251 = vsel %vm564, %v1210, 0
        %v1254 = vsel %vm564, %v1211, 0
        %v1257 = vsel %vm564, %v1212, 0
        %v1260 = vsel %vm564, %v1213, 0
        %1262 = vmatprep.subr.bf16.mxu0 0
        %1263 = vmatpush1.bf16.msra.mxu0 %v1230
        %1264 = vmatprep.subr.bf16.mxu0 0
        %1265 = vmatpush1.bf16.msra.mxu0 %v1231
        %1266 = vmatprep.subr.bf16.mxu0 0
        %1267 = vmatpush1.bf16.msra.mxu0 %v1232
        %1268 = vmatprep.subr.bf16.mxu0 0
        %1269 = vmatpush1.bf16.msra.mxu0 %v1233
        %1270 = vmatprep.subr.bf16.mxu0 0
        %1271 = vmatpush1.bf16.msra.mxu0 0
        %1272 = vmatprep.subr.bf16.mxu0 0
        %1273 = vmatpush1.bf16.msra.mxu0 0
        %1274 = vmatprep.subr.bf16.mxu0 0
        %1275 = vmatpush1.bf16.msra.mxu0 0
        %1276 = vmatprep.subr.bf16.mxu0 0
        %1277 = vmatpush1.bf16.msra.mxu0 0
        %1278 = vmatprep.subr.bf16.mxu0 0
        %1279 = vmatpush1.bf16.msra.mxu0 0
        %1280 = vmatprep.subr.bf16.mxu0 0
        %1281 = vmatpush1.bf16.msra.mxu0 0
        %1282 = vmatprep.subr.bf16.mxu0 0
        %1283 = vmatpush1.bf16.msra.mxu0 0
        %1284 = vmatprep.subr.bf16.mxu0 0
        %1285 = vmatpush1.bf16.msra.mxu0 0
        %1286 = vmatprep.subr.bf16.mxu0 0
        %1287 = vmatpush1.bf16.msra.mxu0 0
        %1288 = vmatprep.subr.bf16.mxu0 0
        %1289 = vmatpush1.bf16.msra.mxu0 0
        %1290 = vmatprep.subr.bf16.mxu0 0
        %1291 = vmatpush1.bf16.msra.mxu0 0
        %1292 = vmatprep.subr.bf16.mxu0 0
        %1293 = vmatpush1.bf16.msra.mxu0 0
        %1294 = vmatprep.mubr.bf16.mxu0 0
        %1295 = vmatmul.mubr.bf16.gmra.mrb[0].mxu0 %v1239
        %v1296 = vpop.f32.mrb[0].mxu0
        %v1297 = vadd.f32 0.0, %v1296
        %v1298 = vpop.f32.mrb[0].mxu0
        %v1299 = vpop.f32.mrb[0].mxu0
        %v1300 = vadd.f32 0.0, %v1299
        %v1301 = vpop.f32.mrb[0].mxu0
        %1302 = vmatprep.mubr.bf16.mxu0 0
        %1303 = vmatmul.mubr.bf16.gmra.mrb[0].mxu0 %v1242
        %v1304 = vpop.f32.mrb[0].mxu0
        %v1305 = vadd.f32 0.0, %v1304
        %v1306 = vpop.f32.mrb[0].mxu0
        %v1307 = vpop.f32.mrb[0].mxu0
        %v1308 = vadd.f32 0.0, %v1307
        %v1309 = vpop.f32.mrb[0].mxu0
        %1310 = vmatprep.mubr.bf16.mxu0 0
        %1311 = vmatmul.mubr.bf16.gmra.mrb[0].mxu0 %v1245
        %v1312 = vpop.f32.mrb[0].mxu0
        %v1313 = vadd.f32 0.0, %v1312
        %v1314 = vpop.f32.mrb[0].mxu0
        %v1315 = vpop.f32.mrb[0].mxu0
        %v1316 = vadd.f32 0.0, %v1315
        %v1317 = vpop.f32.mrb[0].mxu0
        %1318 = vmatprep.mubr.bf16.mxu0 0
        %1319 = vmatmul.mubr.bf16.gmra.mrb[0].mxu0 %v1248
        %v1320 = vpop.f32.mrb[0].mxu0
        %v1321 = vadd.f32 0.0, %v1320
        %v1322 = vpop.f32.mrb[0].mxu0
        %v1323 = vpop.f32.mrb[0].mxu0
        %v1324 = vadd.f32 0.0, %v1323
        %v1325 = vpop.f32.mrb[0].mxu0
        %1326 = vmatprep.mubr.bf16.mxu0 0
        %1327 = vmatmul.mubr.bf16.gmra.mrb[0].mxu0 %v1251
        %v1328 = vpop.f32.mrb[0].mxu0
        %v1329 = vadd.f32 0.0, %v1328
        %v1330 = vpop.f32.mrb[0].mxu0
        %v1331 = vpop.f32.mrb[0].mxu0
        %v1332 = vadd.f32 0.0, %v1331
        %v1333 = vpop.f32.mrb[0].mxu0
        %1334 = vmatprep.mubr.bf16.mxu0 0
        %1335 = vmatmul.mubr.bf16.gmra.mrb[0].mxu0 %v1254
        %v1336 = vpop.f32.mrb[0].mxu0
        %v1337 = vadd.f32 0.0, %v1336
        %v1338 = vpop.f32.mrb[0].mxu0
        %v1339 = vpop.f32.mrb[0].mxu0
        %v1340 = vadd.f32 0.0, %v1339
        %v1341 = vpop.f32.mrb[0].mxu0
        %1342 = vmatprep.mubr.bf16.mxu0 0
        %1343 = vmatmul.mubr.bf16.gmra.mrb[0].mxu0 %v1257
        %v1344 = vpop.f32.mrb[0].mxu0
        %v1345 = vadd.f32 0.0, %v1344
        %v1346 = vpop.f32.mrb[0].mxu0
        %v1347 = vpop.f32.mrb[0].mxu0
        %v1348 = vadd.f32 0.0, %v1347
        %v1349 = vpop.f32.mrb[0].mxu0
        %1350 = vmatprep.mubr.bf16.mxu0 0
        %1351 = vmatmul.mubr.bf16.gmra.mrb[0].mxu0 %v1260
        %v1352 = vpop.f32.mrb[0].mxu0
        %v1353 = vadd.f32 0.0, %v1352
        %v1354 = vpop.f32.mrb[0].mxu0
        %v1355 = vpop.f32.mrb[0].mxu0
        %v1356 = vadd.f32 0.0, %v1355
        %v1357 = vpop.f32.mrb[0].mxu0
        %1358 = vdwg.mxu0
        %v1359 = vadd.f32 %v1132, %v1297
        %v1360 = vadd.f32 %v1133, %v1300
        %v1361 = vadd.f32 %v1134, %v1305
        %v1362 = vadd.f32 %v1135, %v1308
        %v1363 = vadd.f32 %v1136, %v1313
        %v1364 = vadd.f32 %v1137, %v1316
        %v1365 = vadd.f32 %v1138, %v1321
        %v1366 = vadd.f32 %v1139, %v1324
        %v1367 = vadd.f32 %v1140, %v1329
        %v1368 = vadd.f32 %v1141, %v1332
        %v1369 = vadd.f32 %v1142, %v1337
        %v1370 = vadd.f32 %v1143, %v1340
        %v1371 = vadd.f32 %v1144, %v1345
        %v1372 = vadd.f32 %v1145, %v1348
        %v1373 = vadd.f32 %v1146, %v1353
        %v1374 = vadd.f32 %v1147, %v1356
        %v1375 = vld [vmem:[%s1148] sm:$0xf]
        %v1376 = vld [vmem:[%s1148 + $0x4] sm:$0xf]
        %v1377 = vld [vmem:[%s1148 + $0x8] sm:$0x1]
        %v1378 = vld [vmem:[%s1148 + $0xc] sm:$0xf]
        %v1379 = vld [vmem:[%s1148 + $0x10] sm:$0xf]
        %v1380 = vld [vmem:[%s1148 + $0x14] sm:$0x1]
        %v1381 = vld [vmem:[%s1148 + $0x18] sm:$0xf]
        %v1382 = vld [vmem:[%s1148 + $0x1c] sm:$0xf]
        %v1383 = vld [vmem:[%s1148 + $0x20] sm:$0x1]
        %v1384 = vld [vmem:[%s1148 + $0x24] sm:$0xf]
        %v1385 = vld [vmem:[%s1148 + $0x28] sm:$0xf]
        %v1386 = vld [vmem:[%s1148 + $0x2c] sm:$0x1]
        %v1387 = vld [vmem:[%s1148 + $0x30] sm:$0xf]
        %v1388 = vld [vmem:[%s1148 + $0x34] sm:$0xf]
        %v1389 = vld [vmem:[%s1148 + $0x38] sm:$0x1]
        %v1390 = vld [vmem:[%s1148 + $0x3c] sm:$0xf]
        %v1391 = vld [vmem:[%s1148 + $0x40] sm:$0xf]
        %v1392 = vld [vmem:[%s1148 + $0x44] sm:$0x1]
        %v1393 = vld [vmem:[%s1148 + $0x48] sm:$0xf]
        %v1394 = vld [vmem:[%s1148 + $0x4c] sm:$0xf]
        %v1395 = vld [vmem:[%s1148 + $0x50] sm:$0x1]
        %v1396 = vld [vmem:[%s1148 + $0x54] sm:$0xf]
        %v1397 = vld [vmem:[%s1148 + $0x58] sm:$0xf]
        %v1398 = vld [vmem:[%s1148 + $0x5c] sm:$0x1]
        %v1400 = vshrl.u32 %v1375, 16
        %v1402 = vrot.slane %v1400, 4
        %v1403 = vshll.u32 %v1375, 16
        %v1405 = vrot.slane %v1403, 5
        %v1406 = vor.u32 %v1402, %v1405
        %v1407 = vrot.slane %v1406, 4
        %v1409 = vshll.u32 %v1376, 16
        %v1411 = vrot.slane %v1409, 5
        %v1412 = vsel %vm314, %v1407, %v1411
        %v1413 = vshrl.u32 %v1376, 16
        %v1415 = vrot.slane %v1413, 4
        %v1416 = vor.u32 %v1415, %v1411
        %v1417 = vrot.slane %v1416, 4
        %v1419 = vshll.u32 %v1377, 16
        %v1421 = vrot.slane %v1419, 5
        %v1422 = vsel %vm314, %v1417, %v1421
        %v1424 = vshrl.u32 %v1378, 16
        %v1426 = vrot.slane %v1424, 4
        %v1427 = vshll.u32 %v1378, 16
        %v1429 = vrot.slane %v1427, 5
        %v1430 = vor.u32 %v1426, %v1429
        %v1431 = vrot.slane %v1430, 4
        %v1433 = vshll.u32 %v1379, 16
        %v1435 = vrot.slane %v1433, 5
        %v1436 = vsel %vm314, %v1431, %v1435
        %v1437 = vshrl.u32 %v1379, 16
        %v1439 = vrot.slane %v1437, 4
        %v1440 = vor.u32 %v1439, %v1435
        %v1441 = vrot.slane %v1440, 4
        %v1443 = vshll.u32 %v1380, 16
        %v1445 = vrot.slane %v1443, 5
        %v1446 = vsel %vm314, %v1441, %v1445
        %v1448 = vshrl.u32 %v1381, 16
        %v1450 = vrot.slane %v1448, 4
        %v1451 = vshll.u32 %v1381, 16
        %v1453 = vrot.slane %v1451, 5
        %v1454 = vor.u32 %v1450, %v1453
        %v1455 = vrot.slane %v1454, 4
        %v1457 = vshll.u32 %v1382, 16
        %v1459 = vrot.slane %v1457, 5
        %v1460 = vsel %vm314, %v1455, %v1459
        %v1461 = vshrl.u32 %v1382, 16
        %v1463 = vrot.slane %v1461, 4
        %v1464 = vor.u32 %v1463, %v1459
        %v1465 = vrot.slane %v1464, 4
        %v1467 = vshll.u32 %v1383, 16
        %v1469 = vrot.slane %v1467, 5
        %v1470 = vsel %vm314, %v1465, %v1469
        %v1472 = vshrl.u32 %v1384, 16
        %v1474 = vrot.slane %v1472, 4
        %v1475 = vshll.u32 %v1384, 16
        %v1477 = vrot.slane %v1475, 5
        %v1478 = vor.u32 %v1474, %v1477
        %v1479 = vrot.slane %v1478, 4
        %v1481 = vshll.u32 %v1385, 16
        %v1483 = vrot.slane %v1481, 5
        %v1484 = vsel %vm314, %v1479, %v1483
        %v1485 = vshrl.u32 %v1385, 16
        %v1487 = vrot.slane %v1485, 4
        %v1488 = vor.u32 %v1487, %v1483
        %v1489 = vrot.slane %v1488, 4
        %v1491 = vshll.u32 %v1386, 16
        %v1493 = vrot.slane %v1491, 5
        %v1494 = vsel %vm314, %v1489, %v1493
        %v1496 = vshrl.u32 %v1387, 16
        %v1498 = vrot.slane %v1496, 4
        %v1499 = vshll.u32 %v1387, 16
        %v1501 = vrot.slane %v1499, 5
        %v1502 = vor.u32 %v1498, %v1501
        %v1503 = vrot.slane %v1502, 4
        %v1505 = vshll.u32 %v1388, 16
        %v1507 = vrot.slane %v1505, 5
        %v1508 = vsel %vm314, %v1503, %v1507
        %v1509 = vshrl.u32 %v1388, 16
        %v1511 = vrot.slane %v1509, 4
        %v1512 = vor.u32 %v1511, %v1507
        %v1513 = vrot.slane %v1512, 4
        %v1515 = vshll.u32 %v1389, 16
        %v1517 = vrot.slane %v1515, 5
        %v1518 = vsel %vm314, %v1513, %v1517
        %v1520 = vshrl.u32 %v1390, 16
        %v1522 = vrot.slane %v1520, 4
        %v1523 = vshll.u32 %v1390, 16
        %v1525 = vrot.slane %v1523, 5
        %v1526 = vor.u32 %v1522, %v1525
        %v1527 = vrot.slane %v1526, 4
        %v1529 = vshll.u32 %v1391, 16
        %v1531 = vrot.slane %v1529, 5
        %v1532 = vsel %vm314, %v1527, %v1531
        %v1533 = vshrl.u32 %v1391, 16
        %v1535 = vrot.slane %v1533, 4
        %v1536 = vor.u32 %v1535, %v1531
        %v1537 = vrot.slane %v1536, 4
        %v1539 = vshll.u32 %v1392, 16
        %v1541 = vrot.slane %v1539, 5
        %v1542 = vsel %vm314, %v1537, %v1541
        %v1544 = vshrl.u32 %v1393, 16
        %v1546 = vrot.slane %v1544, 4
        %v1547 = vshll.u32 %v1393, 16
        %v1549 = vrot.slane %v1547, 5
        %v1550 = vor.u32 %v1546, %v1549
        %v1551 = vrot.slane %v1550, 4
        %v1553 = vshll.u32 %v1394, 16
        %v1555 = vrot.slane %v1553, 5
        %v1556 = vsel %vm314, %v1551, %v1555
        %v1557 = vshrl.u32 %v1394, 16
        %v1559 = vrot.slane %v1557, 4
        %v1560 = vor.u32 %v1559, %v1555
        %v1561 = vrot.slane %v1560, 4
        %v1563 = vshll.u32 %v1395, 16
        %v1565 = vrot.slane %v1563, 5
        %v1566 = vsel %vm314, %v1561, %v1565
        %v1568 = vshrl.u32 %v1396, 16
        %v1570 = vrot.slane %v1568, 4
        %v1571 = vshll.u32 %v1396, 16
        %v1573 = vrot.slane %v1571, 5
        %v1574 = vor.u32 %v1570, %v1573
        %v1575 = vrot.slane %v1574, 4
        %v1577 = vshll.u32 %v1397, 16
        %v1579 = vrot.slane %v1577, 5
        %v1580 = vsel %vm314, %v1575, %v1579
        %v1581 = vshrl.u32 %v1397, 16
        %v1583 = vrot.slane %v1581, 4
        %v1584 = vor.u32 %v1583, %v1579
        %v1585 = vrot.slane %v1584, 4
        %v1587 = vshll.u32 %v1398, 16
        %v1589 = vrot.slane %v1587, 5
        %v1590 = vsel %vm314, %v1585, %v1589
        %s1591 = scalar_lea.vmem %s271, 128
        %v1592 = vld [vmem:[%s1591] sm:$0xf]
        %v1593 = vld [vmem:[%s1591 + $0x4] sm:$0xf]
        %v1594 = vld [vmem:[%s1591 + $0x8] sm:$0xf]
        %v1595 = vld [vmem:[%s1591 + $0xc] sm:$0xf]
        %v1596 = vld [vmem:[%s1591 + $0x10] sm:$0xf]
        %v1597 = vld [vmem:[%s1591 + $0x14] sm:$0xf]
        %v1598 = vld [vmem:[%s1591 + $0x18] sm:$0xf]
        %v1599 = vld [vmem:[%s1591 + $0x1c] sm:$0xf]
        %v1600 = vunpack.c.l.b16 %v1412
        %v1601 = vunpack.c.l.b16 %v1422
        %v1602 = vunpack.c.l.b16 %v1436
        %v1603 = vunpack.c.l.b16 %v1446
        %v1604 = vunpack.c.l.b16 %v1460
        %v1605 = vunpack.c.l.b16 %v1470
        %v1606 = vunpack.c.l.b16 %v1484
        %v1607 = vunpack.c.l.b16 %v1494
        %v1608 = vunpack.c.l.b16 %v1508
        %v1609 = vunpack.c.l.b16 %v1518
        %v1610 = vunpack.c.l.b16 %v1532
        %v1611 = vunpack.c.l.b16 %v1542
        %v1612 = vunpack.c.l.b16 %v1556
        %v1613 = vunpack.c.l.b16 %v1566
        %v1614 = vunpack.c.l.b16 %v1580
        %v1615 = vunpack.c.l.b16 %v1590
        %v1616 = vpack.c.b16 %v1601, %v1600
        %v1617 = vpack.c.b16 %v1603, %v1602
        %v1618 = vpack.c.b16 %v1605, %v1604
        %v1619 = vpack.c.b16 %v1607, %v1606
        %v1620 = vpack.c.b16 %v1609, %v1608
        %v1621 = vpack.c.b16 %v1611, %v1610
        %v1622 = vpack.c.b16 %v1613, %v1612
        %v1623 = vpack.c.b16 %v1615, %v1614
        %v1632 = vunpack.c.l.b16 %v1592
        %v1633 = vunpack.c.l.b16 %v1593
        %v1634 = vunpack.c.l.b16 %v1594
        %v1635 = vunpack.c.l.b16 %v1595
        %v1636 = vunpack.c.l.b16 %v1596
        %v1637 = vunpack.c.l.b16 %v1597
        %v1638 = vunpack.c.l.b16 %v1598
        %v1639 = vunpack.c.l.b16 %v1599
        %v1640 = vpack.c.b16 %v1633, %v1632
        %v1641 = vpack.c.b16 %v1635, %v1634
        %v1642 = vpack.c.b16 %v1637, %v1636
        %v1643 = vpack.c.b16 %v1639, %v1638
        %v1649 = vsel %vm564, %v1616, 0
        %v1652 = vsel %vm564, %v1617, 0
        %v1655 = vsel %vm564, %v1618, 0
        %v1658 = vsel %vm564, %v1619, 0
        %v1661 = vsel %vm564, %v1620, 0
        %v1664 = vsel %vm564, %v1621, 0
        %v1667 = vsel %vm564, %v1622, 0
        %v1670 = vsel %vm564, %v1623, 0
        %1672 = vmatprep.subr.bf16.mxu0 0
        %1673 = vmatpush1.bf16.msra.mxu0 %v1640
        %1674 = vmatprep.subr.bf16.mxu0 0
        %1675 = vmatpush1.bf16.msra.mxu0 %v1641
        %1676 = vmatprep.subr.bf16.mxu0 0
        %1677 = vmatpush1.bf16.msra.mxu0 %v1642
        %1678 = vmatprep.subr.bf16.mxu0 0
        %1679 = vmatpush1.bf16.msra.mxu0 %v1643
        %1680 = vmatprep.subr.bf16.mxu0 0
        %1681 = vmatpush1.bf16.msra.mxu0 0
        %1682 = vmatprep.subr.bf16.mxu0 0
        %1683 = vmatpush1.bf16.msra.mxu0 0
        %1684 = vmatprep.subr.bf16.mxu0 0
        %1685 = vmatpush1.bf16.msra.mxu0 0
        %1686 = vmatprep.subr.bf16.mxu0 0
        %1687 = vmatpush1.bf16.msra.mxu0 0
        %1688 = vmatprep.subr.bf16.mxu0 0
        %1689 = vmatpush1.bf16.msra.mxu0 0
        %1690 = vmatprep.subr.bf16.mxu0 0
        %1691 = vmatpush1.bf16.msra.mxu0 0
        %1692 = vmatprep.subr.bf16.mxu0 0
        %1693 = vmatpush1.bf16.msra.mxu0 0
        %1694 = vmatprep.subr.bf16.mxu0 0
        %1695 = vmatpush1.bf16.msra.mxu0 0
        %1696 = vmatprep.subr.bf16.mxu0 0
        %1697 = vmatpush1.bf16.msra.mxu0 0
        %1698 = vmatprep.subr.bf16.mxu0 0
        %1699 = vmatpush1.bf16.msra.mxu0 0
        %1700 = vmatprep.subr.bf16.mxu0 0
        %1701 = vmatpush1.bf16.msra.mxu0 0
        %1702 = vmatprep.subr.bf16.mxu0 0
        %1703 = vmatpush1.bf16.msra.mxu0 0
        %1704 = vmatprep.mubr.bf16.mxu0 0
        %1705 = vmatmul.mubr.bf16.gmra.mrb[0].mxu0 %v1649
        %v1706 = vpop.f32.mrb[0].mxu0
        %v1707 = vadd.f32 0.0, %v1706
        %v1708 = vpop.f32.mrb[0].mxu0
        %v1709 = vpop.f32.mrb[0].mxu0
        %v1710 = vadd.f32 0.0, %v1709
        %v1711 = vpop.f32.mrb[0].mxu0
        %1712 = vmatprep.mubr.bf16.mxu0 0
        %1713 = vmatmul.mubr.bf16.gmra.mrb[0].mxu0 %v1652
        %v1714 = vpop.f32.mrb[0].mxu0
        %v1715 = vadd.f32 0.0, %v1714
        %v1716 = vpop.f32.mrb[0].mxu0
        %v1717 = vpop.f32.mrb[0].mxu0
        %v1718 = vadd.f32 0.0, %v1717
        %v1719 = vpop.f32.mrb[0].mxu0
        %1720 = vmatprep.mubr.bf16.mxu0 0
        %1721 = vmatmul.mubr.bf16.gmra.mrb[0].mxu0 %v1655
        %v1722 = vpop.f32.mrb[0].mxu0
        %v1723 = vadd.f32 0.0, %v1722
        %v1724 = vpop.f32.mrb[0].mxu0
        %v1725 = vpop.f32.mrb[0].mxu0
        %v1726 = vadd.f32 0.0, %v1725
        %v1727 = vpop.f32.mrb[0].mxu0
        %1728 = vmatprep.mubr.bf16.mxu0 0
        %1729 = vmatmul.mubr.bf16.gmra.mrb[0].mxu0 %v1658
        %v1730 = vpop.f32.mrb[0].mxu0
        %v1731 = vadd.f32 0.0, %v1730
        %v1732 = vpop.f32.mrb[0].mxu0
        %v1733 = vpop.f32.mrb[0].mxu0
        %v1734 = vadd.f32 0.0, %v1733
        %v1735 = vpop.f32.mrb[0].mxu0
        %1736 = vmatprep.mubr.bf16.mxu0 0
        %1737 = vmatmul.mubr.bf16.gmra.mrb[0].mxu0 %v1661
        %v1738 = vpop.f32.mrb[0].mxu0
        %v1739 = vadd.f32 0.0, %v1738
        %v1740 = vpop.f32.mrb[0].mxu0
        %v1741 = vpop.f32.mrb[0].mxu0
        %v1742 = vadd.f32 0.0, %v1741
        %v1743 = vpop.f32.mrb[0].mxu0
        %1744 = vmatprep.mubr.bf16.mxu0 0
        %1745 = vmatmul.mubr.bf16.gmra.mrb[0].mxu0 %v1664
        %v1746 = vpop.f32.mrb[0].mxu0
        %v1747 = vadd.f32 0.0, %v1746
        %v1748 = vpop.f32.mrb[0].mxu0
        %v1749 = vpop.f32.mrb[0].mxu0
        %v1750 = vadd.f32 0.0, %v1749
        %v1751 = vpop.f32.mrb[0].mxu0
        %1752 = vmatprep.mubr.bf16.mxu0 0
        %1753 = vmatmul.mubr.bf16.gmra.mrb[0].mxu0 %v1667
        %v1754 = vpop.f32.mrb[0].mxu0
        %v1755 = vadd.f32 0.0, %v1754
        %v1756 = vpop.f32.mrb[0].mxu0
        %v1757 = vpop.f32.mrb[0].mxu0
        %v1758 = vadd.f32 0.0, %v1757
        %v1759 = vpop.f32.mrb[0].mxu0
        %1760 = vmatprep.mubr.bf16.mxu0 0
        %1761 = vmatmul.mubr.bf16.gmra.mrb[0].mxu0 %v1670
        %v1762 = vpop.f32.mrb[0].mxu0
        %v1763 = vadd.f32 0.0, %v1762
        %v1764 = vpop.f32.mrb[0].mxu0
        %v1765 = vpop.f32.mrb[0].mxu0
        %v1766 = vadd.f32 0.0, %v1765
        %v1767 = vpop.f32.mrb[0].mxu0
        %1768 = vdwg.mxu0
        %v1769 = vadd.f32 %v1359, %v1707
        %v1770 = vadd.f32 %v1360, %v1710
        %v1771 = vadd.f32 %v1361, %v1715
        %v1772 = vadd.f32 %v1362, %v1718
        %v1773 = vadd.f32 %v1363, %v1723
        %v1774 = vadd.f32 %v1364, %v1726
        %v1775 = vadd.f32 %v1365, %v1731
        %v1776 = vadd.f32 %v1366, %v1734
        %v1777 = vadd.f32 %v1367, %v1739
        %v1778 = vadd.f32 %v1368, %v1742
        %v1779 = vadd.f32 %v1369, %v1747
        %v1780 = vadd.f32 %v1370, %v1750
        %v1781 = vadd.f32 %v1371, %v1755
        %v1782 = vadd.f32 %v1372, %v1758
        %v1783 = vadd.f32 %v1373, %v1763
        %v1784 = vadd.f32 %v1374, %v1766
        %v1785 = vld [vmem:[%s1148] sm:$0xe]
        %v1786 = vld [vmem:[%s1148 + $0xc] sm:$0xe]
        %v1787 = vld [vmem:[%s1148 + $0x18] sm:$0xe]
        %v1788 = vld [vmem:[%s1148 + $0x24] sm:$0xe]
        %v1789 = vld [vmem:[%s1148 + $0x30] sm:$0xe]
        %v1790 = vld [vmem:[%s1148 + $0x3c] sm:$0xe]
        %v1791 = vld [vmem:[%s1148 + $0x48] sm:$0xe]
        %v1792 = vld [vmem:[%s1148 + $0x54] sm:$0xe]
        %v1817 = vrot.slane %v1785, 5
        %v1818 = vrot.slane %v1817, 4
        %v1819 = vrot.slane %v1376, 5
        %v1820 = vsel %vm897, %v1818, %v1819
        %v1821 = vrot.slane %v1819, 4
        %v1822 = vrot.slane %v1377, 5
        %v1823 = vsel %vm897, %v1821, %v1822
        %v1824 = vrot.slane %v1786, 5
        %v1825 = vrot.slane %v1824, 4
        %v1826 = vrot.slane %v1379, 5
        %v1827 = vsel %vm897, %v1825, %v1826
        %v1828 = vrot.slane %v1826, 4
        %v1829 = vrot.slane %v1380, 5
        %v1830 = vsel %vm897, %v1828, %v1829
        %v1831 = vrot.slane %v1787, 5
        %v1832 = vrot.slane %v1831, 4
        %v1833 = vrot.slane %v1382, 5
        %v1834 = vsel %vm897, %v1832, %v1833
        %v1835 = vrot.slane %v1833, 4
        %v1836 = vrot.slane %v1383, 5
        %v1837 = vsel %vm897, %v1835, %v1836
        %v1838 = vrot.slane %v1788, 5
        %v1839 = vrot.slane %v1838, 4
        %v1840 = vrot.slane %v1385, 5
        %v1841 = vsel %vm897, %v1839, %v1840
        %v1842 = vrot.slane %v1840, 4
        %v1843 = vrot.slane %v1386, 5
        %v1844 = vsel %vm897, %v1842, %v1843
        %v1845 = vrot.slane %v1789, 5
        %v1846 = vrot.slane %v1845, 4
        %v1847 = vrot.slane %v1388, 5
        %v1848 = vsel %vm897, %v1846, %v1847
        %v1849 = vrot.slane %v1847, 4
        %v1850 = vrot.slane %v1389, 5
        %v1851 = vsel %vm897, %v1849, %v1850
        %v1852 = vrot.slane %v1790, 5
        %v1853 = vrot.slane %v1852, 4
        %v1854 = vrot.slane %v1391, 5
        %v1855 = vsel %vm897, %v1853, %v1854
        %v1856 = vrot.slane %v1854, 4
        %v1857 = vrot.slane %v1392, 5
        %v1858 = vsel %vm897, %v1856, %v1857
        %v1859 = vrot.slane %v1791, 5
        %v1860 = vrot.slane %v1859, 4
        %v1861 = vrot.slane %v1394, 5
        %v1862 = vsel %vm897, %v1860, %v1861
        %v1863 = vrot.slane %v1861, 4
        %v1864 = vrot.slane %v1395, 5
        %v1865 = vsel %vm897, %v1863, %v1864
        %v1866 = vrot.slane %v1792, 5
        %v1867 = vrot.slane %v1866, 4
        %v1868 = vrot.slane %v1397, 5
        %v1869 = vsel %vm897, %v1867, %v1868
        %v1870 = vrot.slane %v1868, 4
        %v1871 = vrot.slane %v1398, 5
        %v1872 = vsel %vm897, %v1870, %v1871
        %s1873 = scalar_lea.vmem %s271, 160
        %v1874 = vld [vmem:[%s1873] sm:$0xf]
        %v1875 = vld [vmem:[%s1873 + $0x4] sm:$0xf]
        %v1876 = vld [vmem:[%s1873 + $0x8] sm:$0xf]
        %v1877 = vld [vmem:[%s1873 + $0xc] sm:$0xf]
        %v1878 = vld [vmem:[%s1873 + $0x10] sm:$0xf]
        %v1879 = vld [vmem:[%s1873 + $0x14] sm:$0xf]
        %v1880 = vld [vmem:[%s1873 + $0x18] sm:$0xf]
        %v1881 = vld [vmem:[%s1873 + $0x1c] sm:$0xf]
        %v1882 = vunpack.c.l.b16 %v1820
        %v1883 = vunpack.c.l.b16 %v1823
        %v1884 = vunpack.c.l.b16 %v1827
        %v1885 = vunpack.c.l.b16 %v1830
        %v1886 = vunpack.c.l.b16 %v1834
        %v1887 = vunpack.c.l.b16 %v1837
        %v1888 = vunpack.c.l.b16 %v1841
        %v1889 = vunpack.c.l.b16 %v1844
        %v1890 = vunpack.c.l.b16 %v1848
        %v1891 = vunpack.c.l.b16 %v1851
        %v1892 = vunpack.c.l.b16 %v1855
        %v1893 = vunpack.c.l.b16 %v1858
        %v1894 = vunpack.c.l.b16 %v1862
        %v1895 = vunpack.c.l.b16 %v1865
        %v1896 = vunpack.c.l.b16 %v1869
        %v1897 = vunpack.c.l.b16 %v1872
        %v1898 = vpack.c.b16 %v1883, %v1882
        %v1899 = vpack.c.b16 %v1885, %v1884
        %v1900 = vpack.c.b16 %v1887, %v1886
        %v1901 = vpack.c.b16 %v1889, %v1888
        %v1902 = vpack.c.b16 %v1891, %v1890
        %v1903 = vpack.c.b16 %v1893, %v1892
        %v1904 = vpack.c.b16 %v1895, %v1894
        %v1905 = vpack.c.b16 %v1897, %v1896
        %v1914 = vunpack.c.l.b16 %v1874
        %v1915 = vunpack.c.l.b16 %v1875
        %v1916 = vunpack.c.l.b16 %v1876
        %v1917 = vunpack.c.l.b16 %v1877
        %v1918 = vunpack.c.l.b16 %v1878
        %v1919 = vunpack.c.l.b16 %v1879
        %v1920 = vunpack.c.l.b16 %v1880
        %v1921 = vunpack.c.l.b16 %v1881
        %v1922 = vpack.c.b16 %v1915, %v1914
        %v1923 = vpack.c.b16 %v1917, %v1916
        %v1924 = vpack.c.b16 %v1919, %v1918
        %v1925 = vpack.c.b16 %v1921, %v1920
        %v1931 = vsel %vm564, %v1898, 0
        %v1934 = vsel %vm564, %v1899, 0
        %v1937 = vsel %vm564, %v1900, 0
        %v1940 = vsel %vm564, %v1901, 0
        %v1943 = vsel %vm564, %v1902, 0
        %v1946 = vsel %vm564, %v1903, 0
        %v1949 = vsel %vm564, %v1904, 0
        %v1952 = vsel %vm564, %v1905, 0
        %1954 = vmatprep.subr.bf16.mxu0 0
        %1955 = vmatpush1.bf16.msra.mxu0 %v1922
        %1956 = vmatprep.subr.bf16.mxu0 0
        %1957 = vmatpush1.bf16.msra.mxu0 %v1923
        %1958 = vmatprep.subr.bf16.mxu0 0
        %1959 = vmatpush1.bf16.msra.mxu0 %v1924
        %1960 = vmatprep.subr.bf16.mxu0 0
        %1961 = vmatpush1.bf16.msra.mxu0 %v1925
        %1962 = vmatprep.subr.bf16.mxu0 0
        %1963 = vmatpush1.bf16.msra.mxu0 0
        %1964 = vmatprep.subr.bf16.mxu0 0
        %1965 = vmatpush1.bf16.msra.mxu0 0
        %1966 = vmatprep.subr.bf16.mxu0 0
        %1967 = vmatpush1.bf16.msra.mxu0 0
        %1968 = vmatprep.subr.bf16.mxu0 0
        %1969 = vmatpush1.bf16.msra.mxu0 0
        %1970 = vmatprep.subr.bf16.mxu0 0
        %1971 = vmatpush1.bf16.msra.mxu0 0
        %1972 = vmatprep.subr.bf16.mxu0 0
        %1973 = vmatpush1.bf16.msra.mxu0 0
        %1974 = vmatprep.subr.bf16.mxu0 0
        %1975 = vmatpush1.bf16.msra.mxu0 0
        %1976 = vmatprep.subr.bf16.mxu0 0
        %1977 = vmatpush1.bf16.msra.mxu0 0
        %1978 = vmatprep.subr.bf16.mxu0 0
        %1979 = vmatpush1.bf16.msra.mxu0 0
        %1980 = vmatprep.subr.bf16.mxu0 0
        %1981 = vmatpush1.bf16.msra.mxu0 0
        %1982 = vmatprep.subr.bf16.mxu0 0
        %1983 = vmatpush1.bf16.msra.mxu0 0
        %1984 = vmatprep.subr.bf16.mxu0 0
        %1985 = vmatpush1.bf16.msra.mxu0 0
        %1986 = vmatprep.mubr.bf16.mxu0 0
        %1987 = vmatmul.mubr.bf16.gmra.mrb[0].mxu0 %v1931
        %v1988 = vpop.f32.mrb[0].mxu0
        %v1989 = vadd.f32 0.0, %v1988
        %v1990 = vpop.f32.mrb[0].mxu0
        %v1991 = vpop.f32.mrb[0].mxu0
        %v1992 = vadd.f32 0.0, %v1991
        %v1993 = vpop.f32.mrb[0].mxu0
        %1994 = vmatprep.mubr.bf16.mxu0 0
        %1995 = vmatmul.mubr.bf16.gmra.mrb[0].mxu0 %v1934
        %v1996 = vpop.f32.mrb[0].mxu0
        %v1997 = vadd.f32 0.0, %v1996
        %v1998 = vpop.f32.mrb[0].mxu0
        %v1999 = vpop.f32.mrb[0].mxu0
        %v2000 = vadd.f32 0.0, %v1999
        %v2001 = vpop.f32.mrb[0].mxu0
        %2002 = vmatprep.mubr.bf16.mxu0 0
        %2003 = vmatmul.mubr.bf16.gmra.mrb[0].mxu0 %v1937
        %v2004 = vpop.f32.mrb[0].mxu0
        %v2005 = vadd.f32 0.0, %v2004
        %v2006 = vpop.f32.mrb[0].mxu0
        %v2007 = vpop.f32.mrb[0].mxu0
        %v2008 = vadd.f32 0.0, %v2007
        %v2009 = vpop.f32.mrb[0].mxu0
        %2010 = vmatprep.mubr.bf16.mxu0 0
        %2011 = vmatmul.mubr.bf16.gmra.mrb[0].mxu0 %v1940
        %v2012 = vpop.f32.mrb[0].mxu0
        %v2013 = vadd.f32 0.0, %v2012
        %v2014 = vpop.f32.mrb[0].mxu0
        %v2015 = vpop.f32.mrb[0].mxu0
        %v2016 = vadd.f32 0.0, %v2015
        %v2017 = vpop.f32.mrb[0].mxu0
        %2018 = vmatprep.mubr.bf16.mxu0 0
        %2019 = vmatmul.mubr.bf16.gmra.mrb[0].mxu0 %v1943
        %v2020 = vpop.f32.mrb[0].mxu0
        %v2021 = vadd.f32 0.0, %v2020
        %v2022 = vpop.f32.mrb[0].mxu0
        %v2023 = vpop.f32.mrb[0].mxu0
        %v2024 = vadd.f32 0.0, %v2023
        %v2025 = vpop.f32.mrb[0].mxu0
        %2026 = vmatprep.mubr.bf16.mxu0 0
        %2027 = vmatmul.mubr.bf16.gmra.mrb[0].mxu0 %v1946
        %v2028 = vpop.f32.mrb[0].mxu0
        %v2029 = vadd.f32 0.0, %v2028
        %v2030 = vpop.f32.mrb[0].mxu0
        %v2031 = vpop.f32.mrb[0].mxu0
        %v2032 = vadd.f32 0.0, %v2031
        %v2033 = vpop.f32.mrb[0].mxu0
        %2034 = vmatprep.mubr.bf16.mxu0 0
        %2035 = vmatmul.mubr.bf16.gmra.mrb[0].mxu0 %v1949
        %v2036 = vpop.f32.mrb[0].mxu0
        %v2037 = vadd.f32 0.0, %v2036
        %v2038 = vpop.f32.mrb[0].mxu0
        %v2039 = vpop.f32.mrb[0].mxu0
        %v2040 = vadd.f32 0.0, %v2039
        %v2041 = vpop.f32.mrb[0].mxu0
        %2042 = vmatprep.mubr.bf16.mxu0 0
        %2043 = vmatmul.mubr.bf16.gmra.mrb[0].mxu0 %v1952
        %v2044 = vpop.f32.mrb[0].mxu0
        %v2045 = vadd.f32 0.0, %v2044
        %v2046 = vpop.f32.mrb[0].mxu0
        %v2047 = vpop.f32.mrb[0].mxu0
        %v2048 = vadd.f32 0.0, %v2047
        %v2049 = vpop.f32.mrb[0].mxu0
        %2050 = vdwg.mxu0
        %v2051 = vadd.f32 %v1769, %v1989
        %v2052 = vadd.f32 %v1770, %v1992
        %v2053 = vadd.f32 %v1771, %v1997
        %v2054 = vadd.f32 %v1772, %v2000
        %v2055 = vadd.f32 %v1773, %v2005
        %v2056 = vadd.f32 %v1774, %v2008
        %v2057 = vadd.f32 %v1775, %v2013
        %v2058 = vadd.f32 %v1776, %v2016
        %v2059 = vadd.f32 %v1777, %v2021
        %v2060 = vadd.f32 %v1778, %v2024
        %v2061 = vadd.f32 %v1779, %v2029
        %v2062 = vadd.f32 %v1780, %v2032
        %v2063 = vadd.f32 %v1781, %v2037
        %v2064 = vadd.f32 %v1782, %v2040
        %v2065 = vadd.f32 %v1783, %v2045
        %v2066 = vadd.f32 %v1784, %v2048
        %s2067 = scalar_lea.vmem %s265, 24
        %v2068 = vld [vmem:[%s2067] sm:$0xf]
        %v2069 = vld [vmem:[%s2067 + $0x4] sm:$0xf]
        %v2070 = vld [vmem:[%s2067 + $0xc] sm:$0xf]
        %v2071 = vld [vmem:[%s2067 + $0x10] sm:$0xf]
        %v2072 = vld [vmem:[%s2067 + $0x18] sm:$0xf]
        %v2073 = vld [vmem:[%s2067 + $0x1c] sm:$0xf]
        %v2074 = vld [vmem:[%s2067 + $0x24] sm:$0xf]
        %v2075 = vld [vmem:[%s2067 + $0x28] sm:$0xf]
        %v2076 = vld [vmem:[%s2067 + $0x30] sm:$0xf]
        %v2077 = vld [vmem:[%s2067 + $0x34] sm:$0xf]
        %v2078 = vld [vmem:[%s2067 + $0x3c] sm:$0xf]
        %v2079 = vld [vmem:[%s2067 + $0x40] sm:$0xf]
        %v2080 = vld [vmem:[%s2067 + $0x48] sm:$0xf]
        %v2081 = vld [vmem:[%s2067 + $0x4c] sm:$0xf]
        %v2082 = vld [vmem:[%s2067 + $0x54] sm:$0xf]
        %v2083 = vld [vmem:[%s2067 + $0x58] sm:$0xf]
        %s2084 = scalar_lea.vmem %s271, 192
        %v2085 = vld [vmem:[%s2084] sm:$0xf]
        %v2086 = vld [vmem:[%s2084 + $0x4] sm:$0xf]
        %v2087 = vld [vmem:[%s2084 + $0x8] sm:$0xf]
        %v2088 = vld [vmem:[%s2084 + $0xc] sm:$0xf]
        %v2089 = vld [vmem:[%s2084 + $0x10] sm:$0xf]
        %v2090 = vld [vmem:[%s2084 + $0x14] sm:$0xf]
        %v2091 = vld [vmem:[%s2084 + $0x18] sm:$0xf]
        %v2092 = vld [vmem:[%s2084 + $0x1c] sm:$0xf]
        %v2109 = vunpack.c.l.b16 %v2068
        %v2110 = vunpack.c.l.b16 %v2069
        %v2111 = vunpack.c.l.b16 %v2070
        %v2112 = vunpack.c.l.b16 %v2071
        %v2113 = vunpack.c.l.b16 %v2072
        %v2114 = vunpack.c.l.b16 %v2073
        %v2115 = vunpack.c.l.b16 %v2074
        %v2116 = vunpack.c.l.b16 %v2075
        %v2117 = vunpack.c.l.b16 %v2076
        %v2118 = vunpack.c.l.b16 %v2077
        %v2119 = vunpack.c.l.b16 %v2078
        %v2120 = vunpack.c.l.b16 %v2079
        %v2121 = vunpack.c.l.b16 %v2080
        %v2122 = vunpack.c.l.b16 %v2081
        %v2123 = vunpack.c.l.b16 %v2082
        %v2124 = vunpack.c.l.b16 %v2083
        %v2125 = vpack.c.b16 %v2110, %v2109
        %v2126 = vpack.c.b16 %v2112, %v2111
        %v2127 = vpack.c.b16 %v2114, %v2113
        %v2128 = vpack.c.b16 %v2116, %v2115
        %v2129 = vpack.c.b16 %v2118, %v2117
        %v2130 = vpack.c.b16 %v2120, %v2119
        %v2131 = vpack.c.b16 %v2122, %v2121
        %v2132 = vpack.c.b16 %v2124, %v2123
        %v2141 = vunpack.c.l.b16 %v2085
        %v2142 = vunpack.c.l.b16 %v2086
        %v2143 = vunpack.c.l.b16 %v2087
        %v2144 = vunpack.c.l.b16 %v2088
        %v2145 = vunpack.c.l.b16 %v2089
        %v2146 = vunpack.c.l.b16 %v2090
        %v2147 = vunpack.c.l.b16 %v2091
        %v2148 = vunpack.c.l.b16 %v2092
        %v2149 = vpack.c.b16 %v2142, %v2141
        %v2150 = vpack.c.b16 %v2144, %v2143
        %v2151 = vpack.c.b16 %v2146, %v2145
        %v2152 = vpack.c.b16 %v2148, %v2147
        %v2158 = vsel %vm564, %v2125, 0
        %v2161 = vsel %vm564, %v2126, 0
        %v2164 = vsel %vm564, %v2127, 0
        %v2167 = vsel %vm564, %v2128, 0
        %v2170 = vsel %vm564, %v2129, 0
        %v2173 = vsel %vm564, %v2130, 0
        %v2176 = vsel %vm564, %v2131, 0
        %v2179 = vsel %vm564, %v2132, 0
        %2181 = vmatprep.subr.bf16.mxu0 0
        %2182 = vmatpush1.bf16.msra.mxu0 %v2149
        %2183 = vmatprep.subr.bf16.mxu0 0
        %2184 = vmatpush1.bf16.msra.mxu0 %v2150
        %2185 = vmatprep.subr.bf16.mxu0 0
        %2186 = vmatpush1.bf16.msra.mxu0 %v2151
        %2187 = vmatprep.subr.bf16.mxu0 0
        %2188 = vmatpush1.bf16.msra.mxu0 %v2152
        %2189 = vmatprep.subr.bf16.mxu0 0
        %2190 = vmatpush1.bf16.msra.mxu0 0
        %2191 = vmatprep.subr.bf16.mxu0 0
        %2192 = vmatpush1.bf16.msra.mxu0 0
        %2193 = vmatprep.subr.bf16.mxu0 0
        %2194 = vmatpush1.bf16.msra.mxu0 0
        %2195 = vmatprep.subr.bf16.mxu0 0
        %2196 = vmatpush1.bf16.msra.mxu0 0
        %2197 = vmatprep.subr.bf16.mxu0 0
        %2198 = vmatpush1.bf16.msra.mxu0 0
        %2199 = vmatprep.subr.bf16.mxu0 0
        %2200 = vmatpush1.bf16.msra.mxu0 0
        %2201 = vmatprep.subr.bf16.mxu0 0
        %2202 = vmatpush1.bf16.msra.mxu0 0
        %2203 = vmatprep.subr.bf16.mxu0 0
        %2204 = vmatpush1.bf16.msra.mxu0 0
        %2205 = vmatprep.subr.bf16.mxu0 0
        %2206 = vmatpush1.bf16.msra.mxu0 0
        %2207 = vmatprep.subr.bf16.mxu0 0
        %2208 = vmatpush1.bf16.msra.mxu0 0
        %2209 = vmatprep.subr.bf16.mxu0 0
        %2210 = vmatpush1.bf16.msra.mxu0 0
        %2211 = vmatprep.subr.bf16.mxu0 0
        %2212 = vmatpush1.bf16.msra.mxu0 0
        %2213 = vmatprep.mubr.bf16.mxu0 0
        %2214 = vmatmul.mubr.bf16.gmra.mrb[0].mxu0 %v2158
        %v2215 = vpop.f32.mrb[0].mxu0
        %v2216 = vadd.f32 0.0, %v2215
        %v2217 = vpop.f32.mrb[0].mxu0
        %v2218 = vpop.f32.mrb[0].mxu0
        %v2219 = vadd.f32 0.0, %v2218
        %v2220 = vpop.f32.mrb[0].mxu0
        %2221 = vmatprep.mubr.bf16.mxu0 0
        %2222 = vmatmul.mubr.bf16.gmra.mrb[0].mxu0 %v2161
        %v2223 = vpop.f32.mrb[0].mxu0
        %v2224 = vadd.f32 0.0, %v2223
        %v2225 = vpop.f32.mrb[0].mxu0
        %v2226 = vpop.f32.mrb[0].mxu0
        %v2227 = vadd.f32 0.0, %v2226
        %v2228 = vpop.f32.mrb[0].mxu0
        %2229 = vmatprep.mubr.bf16.mxu0 0
        %2230 = vmatmul.mubr.bf16.gmra.mrb[0].mxu0 %v2164
        %v2231 = vpop.f32.mrb[0].mxu0
        %v2232 = vadd.f32 0.0, %v2231
        %v2233 = vpop.f32.mrb[0].mxu0
        %v2234 = vpop.f32.mrb[0].mxu0
        %v2235 = vadd.f32 0.0, %v2234
        %v2236 = vpop.f32.mrb[0].mxu0
        %2237 = vmatprep.mubr.bf16.mxu0 0
        %2238 = vmatmul.mubr.bf16.gmra.mrb[0].mxu0 %v2167
        %v2239 = vpop.f32.mrb[0].mxu0
        %v2240 = vadd.f32 0.0, %v2239
        %v2241 = vpop.f32.mrb[0].mxu0
        %v2242 = vpop.f32.mrb[0].mxu0
        %v2243 = vadd.f32 0.0, %v2242
        %v2244 = vpop.f32.mrb[0].mxu0
        %2245 = vmatprep.mubr.bf16.mxu0 0
        %2246 = vmatmul.mubr.bf16.gmra.mrb[0].mxu0 %v2170
        %v2247 = vpop.f32.mrb[0].mxu0
        %v2248 = vadd.f32 0.0, %v2247
        %v2249 = vpop.f32.mrb[0].mxu0
        %v2250 = vpop.f32.mrb[0].mxu0
        %v2251 = vadd.f32 0.0, %v2250
        %v2252 = vpop.f32.mrb[0].mxu0
        %2253 = vmatprep.mubr.bf16.mxu0 0
        %2254 = vmatmul.mubr.bf16.gmra.mrb[0].mxu0 %v2173
        %v2255 = vpop.f32.mrb[0].mxu0
        %v2256 = vadd.f32 0.0, %v2255
        %v2257 = vpop.f32.mrb[0].mxu0
        %v2258 = vpop.f32.mrb[0].mxu0
        %v2259 = vadd.f32 0.0, %v2258
        %v2260 = vpop.f32.mrb[0].mxu0
        %2261 = vmatprep.mubr.bf16.mxu0 0
        %2262 = vmatmul.mubr.bf16.gmra.mrb[0].mxu0 %v2176
        %v2263 = vpop.f32.mrb[0].mxu0
        %v2264 = vadd.f32 0.0, %v2263
        %v2265 = vpop.f32.mrb[0].mxu0
        %v2266 = vpop.f32.mrb[0].mxu0
        %v2267 = vadd.f32 0.0, %v2266
        %v2268 = vpop.f32.mrb[0].mxu0
        %2269 = vmatprep.mubr.bf16.mxu0 0
        %2270 = vmatmul.mubr.bf16.gmra.mrb[0].mxu0 %v2179
        %v2271 = vpop.f32.mrb[0].mxu0
        %v2272 = vadd.f32 0.0, %v2271
        %v2273 = vpop.f32.mrb[0].mxu0
        %v2274 = vpop.f32.mrb[0].mxu0
        %v2275 = vadd.f32 0.0, %v2274
        %v2276 = vpop.f32.mrb[0].mxu0
        %2277 = vdwg.mxu0
        %v2278 = vadd.f32 %v2051, %v2216
        %v2279 = vadd.f32 %v2052, %v2219
        %v2280 = vadd.f32 %v2053, %v2224
        %v2281 = vadd.f32 %v2054, %v2227
        %v2282 = vadd.f32 %v2055, %v2232
        %v2283 = vadd.f32 %v2056, %v2235
        %v2284 = vadd.f32 %v2057, %v2240
        %v2285 = vadd.f32 %v2058, %v2243
        %v2286 = vadd.f32 %v2059, %v2248
        %v2287 = vadd.f32 %v2060, %v2251
        %v2288 = vadd.f32 %v2061, %v2256
        %v2289 = vadd.f32 %v2062, %v2259
        %v2290 = vadd.f32 %v2063, %v2264
        %v2291 = vadd.f32 %v2064, %v2267
        %v2292 = vadd.f32 %v2065, %v2272
        %v2293 = vadd.f32 %v2066, %v2275
        %v2294 = vld [vmem:[%s2067] sm:$0xf]
        %v2295 = vld [vmem:[%s2067 + $0x4] sm:$0xf]
        %v2296 = vld [vmem:[%s2067 + $0x8] sm:$0x1]
        %v2297 = vld [vmem:[%s2067 + $0xc] sm:$0xf]
        %v2298 = vld [vmem:[%s2067 + $0x10] sm:$0xf]
        %v2299 = vld [vmem:[%s2067 + $0x14] sm:$0x1]
        %v2300 = vld [vmem:[%s2067 + $0x18] sm:$0xf]
        %v2301 = vld [vmem:[%s2067 + $0x1c] sm:$0xf]
        %v2302 = vld [vmem:[%s2067 + $0x20] sm:$0x1]
        %v2303 = vld [vmem:[%s2067 + $0x24] sm:$0xf]
        %v2304 = vld [vmem:[%s2067 + $0x28] sm:$0xf]
        %v2305 = vld [vmem:[%s2067 + $0x2c] sm:$0x1]
        %v2306 = vld [vmem:[%s2067 + $0x30] sm:$0xf]
        %v2307 = vld [vmem:[%s2067 + $0x34] sm:$0xf]
        %v2308 = vld [vmem:[%s2067 + $0x38] sm:$0x1]
        %v2309 = vld [vmem:[%s2067 + $0x3c] sm:$0xf]
        %v2310 = vld [vmem:[%s2067 + $0x40] sm:$0xf]
        %v2311 = vld [vmem:[%s2067 + $0x44] sm:$0x1]
        %v2312 = vld [vmem:[%s2067 + $0x48] sm:$0xf]
        %v2313 = vld [vmem:[%s2067 + $0x4c] sm:$0xf]
        %v2314 = vld [vmem:[%s2067 + $0x50] sm:$0x1]
        %v2315 = vld [vmem:[%s2067 + $0x54] sm:$0xf]
        %v2316 = vld [vmem:[%s2067 + $0x58] sm:$0xf]
        %v2317 = vld [vmem:[%s2067 + $0x5c] sm:$0x1]
        %v2319 = vshrl.u32 %v2294, 16
        %v2321 = vrot.slane %v2319, 4
        %v2322 = vshll.u32 %v2294, 16
        %v2324 = vrot.slane %v2322, 5
        %v2325 = vor.u32 %v2321, %v2324
        %v2326 = vrot.slane %v2325, 4
        %v2328 = vshll.u32 %v2295, 16
        %v2330 = vrot.slane %v2328, 5
        %v2331 = vsel %vm314, %v2326, %v2330
        %v2332 = vshrl.u32 %v2295, 16
        %v2334 = vrot.slane %v2332, 4
        %v2335 = vor.u32 %v2334, %v2330
        %v2336 = vrot.slane %v2335, 4
        %v2338 = vshll.u32 %v2296, 16
        %v2340 = vrot.slane %v2338, 5
        %v2341 = vsel %vm314, %v2336, %v2340
        %v2343 = vshrl.u32 %v2297, 16
        %v2345 = vrot.slane %v2343, 4
        %v2346 = vshll.u32 %v2297, 16
        %v2348 = vrot.slane %v2346, 5
        %v2349 = vor.u32 %v2345, %v2348
        %v2350 = vrot.slane %v2349, 4
        %v2352 = vshll.u32 %v2298, 16
        %v2354 = vrot.slane %v2352, 5
        %v2355 = vsel %vm314, %v2350, %v2354
        %v2356 = vshrl.u32 %v2298, 16
        %v2358 = vrot.slane %v2356, 4
        %v2359 = vor.u32 %v2358, %v2354
        %v2360 = vrot.slane %v2359, 4
        %v2362 = vshll.u32 %v2299, 16
        %v2364 = vrot.slane %v2362, 5
        %v2365 = vsel %vm314, %v2360, %v2364
        %v2367 = vshrl.u32 %v2300, 16
        %v2369 = vrot.slane %v2367, 4
        %v2370 = vshll.u32 %v2300, 16
        %v2372 = vrot.slane %v2370, 5
        %v2373 = vor.u32 %v2369, %v2372
        %v2374 = vrot.slane %v2373, 4
        %v2376 = vshll.u32 %v2301, 16
        %v2378 = vrot.slane %v2376, 5
        %v2379 = vsel %vm314, %v2374, %v2378
        %v2380 = vshrl.u32 %v2301, 16
        %v2382 = vrot.slane %v2380, 4
        %v2383 = vor.u32 %v2382, %v2378
        %v2384 = vrot.slane %v2383, 4
        %v2386 = vshll.u32 %v2302, 16
        %v2388 = vrot.slane %v2386, 5
        %v2389 = vsel %vm314, %v2384, %v2388
        %v2391 = vshrl.u32 %v2303, 16
        %v2393 = vrot.slane %v2391, 4
        %v2394 = vshll.u32 %v2303, 16
        %v2396 = vrot.slane %v2394, 5
        %v2397 = vor.u32 %v2393, %v2396
        %v2398 = vrot.slane %v2397, 4
        %v2400 = vshll.u32 %v2304, 16
        %v2402 = vrot.slane %v2400, 5
        %v2403 = vsel %vm314, %v2398, %v2402
        %v2404 = vshrl.u32 %v2304, 16
        %v2406 = vrot.slane %v2404, 4
        %v2407 = vor.u32 %v2406, %v2402
        %v2408 = vrot.slane %v2407, 4
        %v2410 = vshll.u32 %v2305, 16
        %v2412 = vrot.slane %v2410, 5
        %v2413 = vsel %vm314, %v2408, %v2412
        %v2415 = vshrl.u32 %v2306, 16
        %v2417 = vrot.slane %v2415, 4
        %v2418 = vshll.u32 %v2306, 16
        %v2420 = vrot.slane %v2418, 5
        %v2421 = vor.u32 %v2417, %v2420
        %v2422 = vrot.slane %v2421, 4
        %v2424 = vshll.u32 %v2307, 16
        %v2426 = vrot.slane %v2424, 5
        %v2427 = vsel %vm314, %v2422, %v2426
        %v2428 = vshrl.u32 %v2307, 16
        %v2430 = vrot.slane %v2428, 4
        %v2431 = vor.u32 %v2430, %v2426
        %v2432 = vrot.slane %v2431, 4
        %v2434 = vshll.u32 %v2308, 16
        %v2436 = vrot.slane %v2434, 5
        %v2437 = vsel %vm314, %v2432, %v2436
        %v2439 = vshrl.u32 %v2309, 16
        %v2441 = vrot.slane %v2439, 4
        %v2442 = vshll.u32 %v2309, 16
        %v2444 = vrot.slane %v2442, 5
        %v2445 = vor.u32 %v2441, %v2444
        %v2446 = vrot.slane %v2445, 4
        %v2448 = vshll.u32 %v2310, 16
        %v2450 = vrot.slane %v2448, 5
        %v2451 = vsel %vm314, %v2446, %v2450
        %v2452 = vshrl.u32 %v2310, 16
        %v2454 = vrot.slane %v2452, 4
        %v2455 = vor.u32 %v2454, %v2450
        %v2456 = vrot.slane %v2455, 4
        %v2458 = vshll.u32 %v2311, 16
        %v2460 = vrot.slane %v2458, 5
        %v2461 = vsel %vm314, %v2456, %v2460
        %v2463 = vshrl.u32 %v2312, 16
        %v2465 = vrot.slane %v2463, 4
        %v2466 = vshll.u32 %v2312, 16
        %v2468 = vrot.slane %v2466, 5
        %v2469 = vor.u32 %v2465, %v2468
        %v2470 = vrot.slane %v2469, 4
        %v2472 = vshll.u32 %v2313, 16
        %v2474 = vrot.slane %v2472, 5
        %v2475 = vsel %vm314, %v2470, %v2474
        %v2476 = vshrl.u32 %v2313, 16
        %v2478 = vrot.slane %v2476, 4
        %v2479 = vor.u32 %v2478, %v2474
        %v2480 = vrot.slane %v2479, 4
        %v2482 = vshll.u32 %v2314, 16
        %v2484 = vrot.slane %v2482, 5
        %v2485 = vsel %vm314, %v2480, %v2484
        %v2487 = vshrl.u32 %v2315, 16
        %v2489 = vrot.slane %v2487, 4
        %v2490 = vshll.u32 %v2315, 16
        %v2492 = vrot.slane %v2490, 5
        %v2493 = vor.u32 %v2489, %v2492
        %v2494 = vrot.slane %v2493, 4
        %v2496 = vshll.u32 %v2316, 16
        %v2498 = vrot.slane %v2496, 5
        %v2499 = vsel %vm314, %v2494, %v2498
        %v2500 = vshrl.u32 %v2316, 16
        %v2502 = vrot.slane %v2500, 4
        %v2503 = vor.u32 %v2502, %v2498
        %v2504 = vrot.slane %v2503, 4
        %v2506 = vshll.u32 %v2317, 16
        %v2508 = vrot.slane %v2506, 5
        %v2509 = vsel %vm314, %v2504, %v2508
        %s2510 = scalar_lea.vmem %s271, 224
        %v2511 = vld [vmem:[%s2510] sm:$0xf]
        %v2512 = vld [vmem:[%s2510 + $0x4] sm:$0xf]
        %v2513 = vld [vmem:[%s2510 + $0x8] sm:$0xf]
        %v2514 = vld [vmem:[%s2510 + $0xc] sm:$0xf]
        %v2515 = vld [vmem:[%s2510 + $0x10] sm:$0xf]
        %v2516 = vld [vmem:[%s2510 + $0x14] sm:$0xf]
        %v2517 = vld [vmem:[%s2510 + $0x18] sm:$0xf]
        %v2518 = vld [vmem:[%s2510 + $0x1c] sm:$0xf]
        %v2519 = vunpack.c.l.b16 %v2331
        %v2520 = vunpack.c.l.b16 %v2341
        %v2521 = vunpack.c.l.b16 %v2355
        %v2522 = vunpack.c.l.b16 %v2365
        %v2523 = vunpack.c.l.b16 %v2379
        %v2524 = vunpack.c.l.b16 %v2389
        %v2525 = vunpack.c.l.b16 %v2403
        %v2526 = vunpack.c.l.b16 %v2413
        %v2527 = vunpack.c.l.b16 %v2427
        %v2528 = vunpack.c.l.b16 %v2437
        %v2529 = vunpack.c.l.b16 %v2451
        %v2530 = vunpack.c.l.b16 %v2461
        %v2531 = vunpack.c.l.b16 %v2475
        %v2532 = vunpack.c.l.b16 %v2485
        %v2533 = vunpack.c.l.b16 %v2499
        %v2534 = vunpack.c.l.b16 %v2509
        %v2535 = vpack.c.b16 %v2520, %v2519
        %v2536 = vpack.c.b16 %v2522, %v2521
        %v2537 = vpack.c.b16 %v2524, %v2523
        %v2538 = vpack.c.b16 %v2526, %v2525
        %v2539 = vpack.c.b16 %v2528, %v2527
        %v2540 = vpack.c.b16 %v2530, %v2529
        %v2541 = vpack.c.b16 %v2532, %v2531
        %v2542 = vpack.c.b16 %v2534, %v2533
        %v2551 = vunpack.c.l.b16 %v2511
        %v2552 = vunpack.c.l.b16 %v2512
        %v2553 = vunpack.c.l.b16 %v2513
        %v2554 = vunpack.c.l.b16 %v2514
        %v2555 = vunpack.c.l.b16 %v2515
        %v2556 = vunpack.c.l.b16 %v2516
        %v2557 = vunpack.c.l.b16 %v2517
        %v2558 = vunpack.c.l.b16 %v2518
        %v2559 = vpack.c.b16 %v2552, %v2551
        %v2560 = vpack.c.b16 %v2554, %v2553
        %v2561 = vpack.c.b16 %v2556, %v2555
        %v2562 = vpack.c.b16 %v2558, %v2557
        %v2568 = vsel %vm564, %v2535, 0
        %v2571 = vsel %vm564, %v2536, 0
        %v2574 = vsel %vm564, %v2537, 0
        %v2577 = vsel %vm564, %v2538, 0
        %v2580 = vsel %vm564, %v2539, 0
        %v2583 = vsel %vm564, %v2540, 0
        %v2586 = vsel %vm564, %v2541, 0
        %v2589 = vsel %vm564, %v2542, 0
        %2591 = vmatprep.subr.bf16.mxu0 0
        %2592 = vmatpush1.bf16.msra.mxu0 %v2559
        %2593 = vmatprep.subr.bf16.mxu0 0
        %2594 = vmatpush1.bf16.msra.mxu0 %v2560
        %2595 = vmatprep.subr.bf16.mxu0 0
        %2596 = vmatpush1.bf16.msra.mxu0 %v2561
        %2597 = vmatprep.subr.bf16.mxu0 0
        %2598 = vmatpush1.bf16.msra.mxu0 %v2562
        %2599 = vmatprep.subr.bf16.mxu0 0
        %2600 = vmatpush1.bf16.msra.mxu0 0
        %2601 = vmatprep.subr.bf16.mxu0 0
        %2602 = vmatpush1.bf16.msra.mxu0 0
        %2603 = vmatprep.subr.bf16.mxu0 0
        %2604 = vmatpush1.bf16.msra.mxu0 0
        %2605 = vmatprep.subr.bf16.mxu0 0
        %2606 = vmatpush1.bf16.msra.mxu0 0
        %2607 = vmatprep.subr.bf16.mxu0 0
        %2608 = vmatpush1.bf16.msra.mxu0 0
        %2609 = vmatprep.subr.bf16.mxu0 0
        %2610 = vmatpush1.bf16.msra.mxu0 0
        %2611 = vmatprep.subr.bf16.mxu0 0
        %2612 = vmatpush1.bf16.msra.mxu0 0
        %2613 = vmatprep.subr.bf16.mxu0 0
        %2614 = vmatpush1.bf16.msra.mxu0 0
        %2615 = vmatprep.subr.bf16.mxu0 0
        %2616 = vmatpush1.bf16.msra.mxu0 0
        %2617 = vmatprep.subr.bf16.mxu0 0
        %2618 = vmatpush1.bf16.msra.mxu0 0
        %2619 = vmatprep.subr.bf16.mxu0 0
        %2620 = vmatpush1.bf16.msra.mxu0 0
        %2621 = vmatprep.subr.bf16.mxu0 0
        %2622 = vmatpush1.bf16.msra.mxu0 0
        %2623 = vmatprep.mubr.bf16.mxu0 0
        %2624 = vmatmul.mubr.bf16.gmra.mrb[0].mxu0 %v2568
        %v2625 = vpop.f32.mrb[0].mxu0
        %v2626 = vadd.f32 0.0, %v2625
        %v2627 = vpop.f32.mrb[0].mxu0
        %v2628 = vpop.f32.mrb[0].mxu0
        %v2629 = vadd.f32 0.0, %v2628
        %v2630 = vpop.f32.mrb[0].mxu0
        %2631 = vmatprep.mubr.bf16.mxu0 0
        %2632 = vmatmul.mubr.bf16.gmra.mrb[0].mxu0 %v2571
        %v2633 = vpop.f32.mrb[0].mxu0
        %v2634 = vadd.f32 0.0, %v2633
        %v2635 = vpop.f32.mrb[0].mxu0
        %v2636 = vpop.f32.mrb[0].mxu0
        %v2637 = vadd.f32 0.0, %v2636
        %v2638 = vpop.f32.mrb[0].mxu0
        %2639 = vmatprep.mubr.bf16.mxu0 0
        %2640 = vmatmul.mubr.bf16.gmra.mrb[0].mxu0 %v2574
        %v2641 = vpop.f32.mrb[0].mxu0
        %v2642 = vadd.f32 0.0, %v2641
        %v2643 = vpop.f32.mrb[0].mxu0
        %v2644 = vpop.f32.mrb[0].mxu0
        %v2645 = vadd.f32 0.0, %v2644
        %v2646 = vpop.f32.mrb[0].mxu0
        %2647 = vmatprep.mubr.bf16.mxu0 0
        %2648 = vmatmul.mubr.bf16.gmra.mrb[0].mxu0 %v2577
        %v2649 = vpop.f32.mrb[0].mxu0
        %v2650 = vadd.f32 0.0, %v2649
        %v2651 = vpop.f32.mrb[0].mxu0
        %v2652 = vpop.f32.mrb[0].mxu0
        %v2653 = vadd.f32 0.0, %v2652
        %v2654 = vpop.f32.mrb[0].mxu0
        %2655 = vmatprep.mubr.bf16.mxu0 0
        %2656 = vmatmul.mubr.bf16.gmra.mrb[0].mxu0 %v2580
        %v2657 = vpop.f32.mrb[0].mxu0
        %v2658 = vadd.f32 0.0, %v2657
        %v2659 = vpop.f32.mrb[0].mxu0
        %v2660 = vpop.f32.mrb[0].mxu0
        %v2661 = vadd.f32 0.0, %v2660
        %v2662 = vpop.f32.mrb[0].mxu0
        %2663 = vmatprep.mubr.bf16.mxu0 0
        %2664 = vmatmul.mubr.bf16.gmra.mrb[0].mxu0 %v2583
        %v2665 = vpop.f32.mrb[0].mxu0
        %v2666 = vadd.f32 0.0, %v2665
        %v2667 = vpop.f32.mrb[0].mxu0
        %v2668 = vpop.f32.mrb[0].mxu0
        %v2669 = vadd.f32 0.0, %v2668
        %v2670 = vpop.f32.mrb[0].mxu0
        %2671 = vmatprep.mubr.bf16.mxu0 0
        %2672 = vmatmul.mubr.bf16.gmra.mrb[0].mxu0 %v2586
        %v2673 = vpop.f32.mrb[0].mxu0
        %v2674 = vadd.f32 0.0, %v2673
        %v2675 = vpop.f32.mrb[0].mxu0
        %v2676 = vpop.f32.mrb[0].mxu0
        %v2677 = vadd.f32 0.0, %v2676
        %v2678 = vpop.f32.mrb[0].mxu0
        %2679 = vmatprep.mubr.bf16.mxu0 0
        %2680 = vmatmul.mubr.bf16.gmra.mrb[0].mxu0 %v2589
        %v2681 = vpop.f32.mrb[0].mxu0
        %v2682 = vadd.f32 0.0, %v2681
        %v2683 = vpop.f32.mrb[0].mxu0
        %v2684 = vpop.f32.mrb[0].mxu0
        %v2685 = vadd.f32 0.0, %v2684
        %v2686 = vpop.f32.mrb[0].mxu0
        %2687 = vdwg.mxu0
        %v2688 = vadd.f32 %v2278, %v2626
        %v2689 = vadd.f32 %v2279, %v2629
        %v2690 = vadd.f32 %v2280, %v2634
        %v2691 = vadd.f32 %v2281, %v2637
        %v2692 = vadd.f32 %v2282, %v2642
        %v2693 = vadd.f32 %v2283, %v2645
        %v2694 = vadd.f32 %v2284, %v2650
        %v2695 = vadd.f32 %v2285, %v2653
        %v2696 = vadd.f32 %v2286, %v2658
        %v2697 = vadd.f32 %v2287, %v2661
        %v2698 = vadd.f32 %v2288, %v2666
        %v2699 = vadd.f32 %v2289, %v2669
        %v2700 = vadd.f32 %v2290, %v2674
        %v2701 = vadd.f32 %v2291, %v2677
        %v2702 = vadd.f32 %v2292, %v2682
        %v2703 = vadd.f32 %v2293, %v2685
        %v2704 = vld [vmem:[%s2067] sm:$0xe]
        %v2705 = vld [vmem:[%s2067 + $0xc] sm:$0xe]
        %v2706 = vld [vmem:[%s2067 + $0x18] sm:$0xe]
        %v2707 = vld [vmem:[%s2067 + $0x24] sm:$0xe]
        %v2708 = vld [vmem:[%s2067 + $0x30] sm:$0xe]
        %v2709 = vld [vmem:[%s2067 + $0x3c] sm:$0xe]
        %v2710 = vld [vmem:[%s2067 + $0x48] sm:$0xe]
        %v2711 = vld [vmem:[%s2067 + $0x54] sm:$0xe]
        %v2736 = vrot.slane %v2704, 5
        %v2737 = vrot.slane %v2736, 4
        %v2738 = vrot.slane %v2295, 5
        %v2739 = vsel %vm897, %v2737, %v2738
        %v2740 = vrot.slane %v2738, 4
        %v2741 = vrot.slane %v2296, 5
        %v2742 = vsel %vm897, %v2740, %v2741
        %v2743 = vrot.slane %v2705, 5
        %v2744 = vrot.slane %v2743, 4
        %v2745 = vrot.slane %v2298, 5
        %v2746 = vsel %vm897, %v2744, %v2745
        %v2747 = vrot.slane %v2745, 4
        %v2748 = vrot.slane %v2299, 5
        %v2749 = vsel %vm897, %v2747, %v2748
        %v2750 = vrot.slane %v2706, 5
        %v2751 = vrot.slane %v2750, 4
        %v2752 = vrot.slane %v2301, 5
        %v2753 = vsel %vm897, %v2751, %v2752
        %v2754 = vrot.slane %v2752, 4
        %v2755 = vrot.slane %v2302, 5
        %v2756 = vsel %vm897, %v2754, %v2755
        %v2757 = vrot.slane %v2707, 5
        %v2758 = vrot.slane %v2757, 4
        %v2759 = vrot.slane %v2304, 5
        %v2760 = vsel %vm897, %v2758, %v2759
        %v2761 = vrot.slane %v2759, 4
        %v2762 = vrot.slane %v2305, 5
        %v2763 = vsel %vm897, %v2761, %v2762
        %v2764 = vrot.slane %v2708, 5
        %v2765 = vrot.slane %v2764, 4
        %v2766 = vrot.slane %v2307, 5
        %v2767 = vsel %vm897, %v2765, %v2766
        %v2768 = vrot.slane %v2766, 4
        %v2769 = vrot.slane %v2308, 5
        %v2770 = vsel %vm897, %v2768, %v2769
        %v2771 = vrot.slane %v2709, 5
        %v2772 = vrot.slane %v2771, 4
        %v2773 = vrot.slane %v2310, 5
        %v2774 = vsel %vm897, %v2772, %v2773
        %v2775 = vrot.slane %v2773, 4
        %v2776 = vrot.slane %v2311, 5
        %v2777 = vsel %vm897, %v2775, %v2776
        %v2778 = vrot.slane %v2710, 5
        %v2779 = vrot.slane %v2778, 4
        %v2780 = vrot.slane %v2313, 5
        %v2781 = vsel %vm897, %v2779, %v2780
        %v2782 = vrot.slane %v2780, 4
        %v2783 = vrot.slane %v2314, 5
        %v2784 = vsel %vm897, %v2782, %v2783
        %v2785 = vrot.slane %v2711, 5
        %v2786 = vrot.slane %v2785, 4
        %v2787 = vrot.slane %v2316, 5
        %v2788 = vsel %vm897, %v2786, %v2787
        %v2789 = vrot.slane %v2787, 4
        %v2790 = vrot.slane %v2317, 5
        %v2791 = vsel %vm897, %v2789, %v2790
        %s2792 = scalar_lea.vmem %s271, 256
        %v2793 = vld [vmem:[%s2792] sm:$0xf]
        %v2794 = vld [vmem:[%s2792 + $0x4] sm:$0xf]
        %v2795 = vld [vmem:[%s2792 + $0x8] sm:$0xf]
        %v2796 = vld [vmem:[%s2792 + $0xc] sm:$0xf]
        %v2797 = vld [vmem:[%s2792 + $0x10] sm:$0xf]
        %v2798 = vld [vmem:[%s2792 + $0x14] sm:$0xf]
        %v2799 = vld [vmem:[%s2792 + $0x18] sm:$0xf]
        %v2800 = vld [vmem:[%s2792 + $0x1c] sm:$0xf]
        %v2801 = vunpack.c.l.b16 %v2739
        %v2802 = vunpack.c.l.b16 %v2742
        %v2803 = vunpack.c.l.b16 %v2746
        %v2804 = vunpack.c.l.b16 %v2749
        %v2805 = vunpack.c.l.b16 %v2753
        %v2806 = vunpack.c.l.b16 %v2756
        %v2807 = vunpack.c.l.b16 %v2760
        %v2808 = vunpack.c.l.b16 %v2763
        %v2809 = vunpack.c.l.b16 %v2767
        %v2810 = vunpack.c.l.b16 %v2770
        %v2811 = vunpack.c.l.b16 %v2774
        %v2812 = vunpack.c.l.b16 %v2777
        %v2813 = vunpack.c.l.b16 %v2781
        %v2814 = vunpack.c.l.b16 %v2784
        %v2815 = vunpack.c.l.b16 %v2788
        %v2816 = vunpack.c.l.b16 %v2791
        %v2817 = vpack.c.b16 %v2802, %v2801
        %v2818 = vpack.c.b16 %v2804, %v2803
        %v2819 = vpack.c.b16 %v2806, %v2805
        %v2820 = vpack.c.b16 %v2808, %v2807
        %v2821 = vpack.c.b16 %v2810, %v2809
        %v2822 = vpack.c.b16 %v2812, %v2811
        %v2823 = vpack.c.b16 %v2814, %v2813
        %v2824 = vpack.c.b16 %v2816, %v2815
        %v2833 = vunpack.c.l.b16 %v2793
        %v2834 = vunpack.c.l.b16 %v2794
        %v2835 = vunpack.c.l.b16 %v2795
        %v2836 = vunpack.c.l.b16 %v2796
        %v2837 = vunpack.c.l.b16 %v2797
        %v2838 = vunpack.c.l.b16 %v2798
        %v2839 = vunpack.c.l.b16 %v2799
        %v2840 = vunpack.c.l.b16 %v2800
        %v2841 = vpack.c.b16 %v2834, %v2833
        %v2842 = vpack.c.b16 %v2836, %v2835
        %v2843 = vpack.c.b16 %v2838, %v2837
        %v2844 = vpack.c.b16 %v2840, %v2839
        %v2850 = vsel %vm564, %v2817, 0
        %v2853 = vsel %vm564, %v2818, 0
        %v2856 = vsel %vm564, %v2819, 0
        %v2859 = vsel %vm564, %v2820, 0
        %v2862 = vsel %vm564, %v2821, 0
        %v2865 = vsel %vm564, %v2822, 0
        %v2868 = vsel %vm564, %v2823, 0
        %v2871 = vsel %vm564, %v2824, 0
        %2873 = vmatprep.subr.bf16.mxu0 0
        %2874 = vmatpush1.bf16.msra.mxu0 %v2841
        %2875 = vmatprep.subr.bf16.mxu0 0
        %2876 = vmatpush1.bf16.msra.mxu0 %v2842
        %2877 = vmatprep.subr.bf16.mxu0 0
        %2878 = vmatpush1.bf16.msra.mxu0 %v2843
        %2879 = vmatprep.subr.bf16.mxu0 0
        %2880 = vmatpush1.bf16.msra.mxu0 %v2844
        %2881 = vmatprep.subr.bf16.mxu0 0
        %2882 = vmatpush1.bf16.msra.mxu0 0
        %2883 = vmatprep.subr.bf16.mxu0 0
        %2884 = vmatpush1.bf16.msra.mxu0 0
        %2885 = vmatprep.subr.bf16.mxu0 0
        %2886 = vmatpush1.bf16.msra.mxu0 0
        %2887 = vmatprep.subr.bf16.mxu0 0
        %2888 = vmatpush1.bf16.msra.mxu0 0
        %2889 = vmatprep.subr.bf16.mxu0 0
        %2890 = vmatpush1.bf16.msra.mxu0 0
        %2891 = vmatprep.subr.bf16.mxu0 0
        %2892 = vmatpush1.bf16.msra.mxu0 0
        %2893 = vmatprep.subr.bf16.mxu0 0
        %2894 = vmatpush1.bf16.msra.mxu0 0
        %2895 = vmatprep.subr.bf16.mxu0 0
        %2896 = vmatpush1.bf16.msra.mxu0 0
        %2897 = vmatprep.subr.bf16.mxu0 0
        %2898 = vmatpush1.bf16.msra.mxu0 0
        %2899 = vmatprep.subr.bf16.mxu0 0
        %2900 = vmatpush1.bf16.msra.mxu0 0
        %2901 = vmatprep.subr.bf16.mxu0 0
        %2902 = vmatpush1.bf16.msra.mxu0 0
        %2903 = vmatprep.subr.bf16.mxu0 0
        %2904 = vmatpush1.bf16.msra.mxu0 0
        %2905 = vmatprep.mubr.bf16.mxu0 0
        %2906 = vmatmul.mubr.bf16.gmra.mrb[0].mxu0 %v2850
        %v2907 = vpop.f32.mrb[0].mxu0
        %v2908 = vadd.f32 0.0, %v2907
        %v2909 = vpop.f32.mrb[0].mxu0
        %v2910 = vpop.f32.mrb[0].mxu0
        %v2911 = vadd.f32 0.0, %v2910
        %v2912 = vpop.f32.mrb[0].mxu0
        %2913 = vmatprep.mubr.bf16.mxu0 0
        %2914 = vmatmul.mubr.bf16.gmra.mrb[0].mxu0 %v2853
        %v2915 = vpop.f32.mrb[0].mxu0
        %v2916 = vadd.f32 0.0, %v2915
        %v2917 = vpop.f32.mrb[0].mxu0
        %v2918 = vpop.f32.mrb[0].mxu0
        %v2919 = vadd.f32 0.0, %v2918
        %v2920 = vpop.f32.mrb[0].mxu0
        %2921 = vmatprep.mubr.bf16.mxu0 0
        %2922 = vmatmul.mubr.bf16.gmra.mrb[0].mxu0 %v2856
        %v2923 = vpop.f32.mrb[0].mxu0
        %v2924 = vadd.f32 0.0, %v2923
        %v2925 = vpop.f32.mrb[0].mxu0
        %v2926 = vpop.f32.mrb[0].mxu0
        %v2927 = vadd.f32 0.0, %v2926
        %v2928 = vpop.f32.mrb[0].mxu0
        %2929 = vmatprep.mubr.bf16.mxu0 0
        %2930 = vmatmul.mubr.bf16.gmra.mrb[0].mxu0 %v2859
        %v2931 = vpop.f32.mrb[0].mxu0
        %v2932 = vadd.f32 0.0, %v2931
        %v2933 = vpop.f32.mrb[0].mxu0
        %v2934 = vpop.f32.mrb[0].mxu0
        %v2935 = vadd.f32 0.0, %v2934
        %v2936 = vpop.f32.mrb[0].mxu0
        %2937 = vmatprep.mubr.bf16.mxu0 0
        %2938 = vmatmul.mubr.bf16.gmra.mrb[0].mxu0 %v2862
        %v2939 = vpop.f32.mrb[0].mxu0
        %v2940 = vadd.f32 0.0, %v2939
        %v2941 = vpop.f32.mrb[0].mxu0
        %v2942 = vpop.f32.mrb[0].mxu0
        %v2943 = vadd.f32 0.0, %v2942
        %v2944 = vpop.f32.mrb[0].mxu0
        %2945 = vmatprep.mubr.bf16.mxu0 0
        %2946 = vmatmul.mubr.bf16.gmra.mrb[0].mxu0 %v2865
        %v2947 = vpop.f32.mrb[0].mxu0
        %v2948 = vadd.f32 0.0, %v2947
        %v2949 = vpop.f32.mrb[0].mxu0
        %v2950 = vpop.f32.mrb[0].mxu0
        %v2951 = vadd.f32 0.0, %v2950
        %v2952 = vpop.f32.mrb[0].mxu0
        %2953 = vmatprep.mubr.bf16.mxu0 0
        %2954 = vmatmul.mubr.bf16.gmra.mrb[0].mxu0 %v2868
        %v2955 = vpop.f32.mrb[0].mxu0
        %v2956 = vadd.f32 0.0, %v2955
        %v2957 = vpop.f32.mrb[0].mxu0
        %v2958 = vpop.f32.mrb[0].mxu0
        %v2959 = vadd.f32 0.0, %v2958
        %v2960 = vpop.f32.mrb[0].mxu0
        %2961 = vmatprep.mubr.bf16.mxu0 0
        %2962 = vmatmul.mubr.bf16.gmra.mrb[0].mxu0 %v2871
        %v2963 = vpop.f32.mrb[0].mxu0
        %v2964 = vadd.f32 0.0, %v2963
        %v2965 = vpop.f32.mrb[0].mxu0
        %v2966 = vpop.f32.mrb[0].mxu0
        %v2967 = vadd.f32 0.0, %v2966
        %v2968 = vpop.f32.mrb[0].mxu0
        %2969 = vdwg.mxu0
        %v2970 = vadd.f32 %v2688, %v2908
        %v2971 = vadd.f32 %v2689, %v2911
        %v2972 = vadd.f32 %v2690, %v2916
        %v2973 = vadd.f32 %v2691, %v2919
        %v2974 = vadd.f32 %v2692, %v2924
        %v2975 = vadd.f32 %v2693, %v2927
        %v2976 = vadd.f32 %v2694, %v2932
        %v2977 = vadd.f32 %v2695, %v2935
        %v2978 = vadd.f32 %v2696, %v2940
        %v2979 = vadd.f32 %v2697, %v2943
        %v2980 = vadd.f32 %v2698, %v2948
        %v2981 = vadd.f32 %v2699, %v2951
        %v2982 = vadd.f32 %v2700, %v2956
        %v2983 = vadd.f32 %v2701, %v2959
        %v2984 = vadd.f32 %v2702, %v2964
        %v2985 = vadd.f32 %v2703, %v2967
        %v2986 = vld [vmem:[%s274] sm:$0x1]
        %v2988 = vlaneseq
        %v2989 = vshrl.u32 %v2988, 7
        %v2990 = vsub.s32 0, %v2989
        %v2991 = vrot.slane %v2986, %v2990
        %v2993 = vmul.f32 %v2970, %v2991
        %v2994 = vmul.f32 %v2971, %v2991
        %v2995 = vmul.f32 %v2972, %v2991
        %v2996 = vmul.f32 %v2973, %v2991
        %v2997 = vmul.f32 %v2974, %v2991
        %v2998 = vmul.f32 %v2975, %v2991
        %v2999 = vmul.f32 %v2976, %v2991
        %v3000 = vmul.f32 %v2977, %v2991
        %v3001 = vmul.f32 %v2978, %v2991
        %v3002 = vmul.f32 %v2979, %v2991
        %v3003 = vmul.f32 %v2980, %v2991
        %v3004 = vmul.f32 %v2981, %v2991
        %v3005 = vmul.f32 %v2982, %v2991
        %v3006 = vmul.f32 %v2983, %v2991
        %v3007 = vmul.f32 %v2984, %v2991
        %v3008 = vmul.f32 %v2985, %v2991
        %v3009 = vld [vmem:[%s277] sm:$0x1]
        %v3011 = vlaneseq
        %v3012 = vshrl.u32 %v3011, 7
        %v3013 = vsub.s32 0, %v3012
        %v3014 = vrot.slane %v3009, %v3013
        %v3016 = vadd.f32 %v2993, %v3014
        %v3017 = vadd.f32 %v2994, %v3014
        %v3018 = vadd.f32 %v2995, %v3014
        %v3019 = vadd.f32 %v2996, %v3014
        %v3020 = vadd.f32 %v2997, %v3014
        %v3021 = vadd.f32 %v2998, %v3014
        %v3022 = vadd.f32 %v2999, %v3014
        %v3023 = vadd.f32 %v3000, %v3014
        %v3024 = vadd.f32 %v3001, %v3014
        %v3025 = vadd.f32 %v3002, %v3014
        %v3026 = vadd.f32 %v3003, %v3014
        %v3027 = vadd.f32 %v3004, %v3014
        %v3028 = vadd.f32 %v3005, %v3014
        %v3029 = vadd.f32 %v3006, %v3014
        %v3030 = vadd.f32 %v3007, %v3014
        %v3031 = vadd.f32 %v3008, %v3014
        %v3032 = vmax.f32 %v3016, 0.0
        %v3033 = vmax.f32 %v3017, 0.0
        %v3034 = vmax.f32 %v3018, 0.0
        %v3035 = vmax.f32 %v3019, 0.0
        %v3036 = vmax.f32 %v3020, 0.0
        %v3037 = vmax.f32 %v3021, 0.0
        %v3038 = vmax.f32 %v3022, 0.0
        %v3039 = vmax.f32 %v3023, 0.0
        %v3040 = vmax.f32 %v3024, 0.0
        %v3041 = vmax.f32 %v3025, 0.0
        %v3042 = vmax.f32 %v3026, 0.0
        %v3043 = vmax.f32 %v3027, 0.0
        %v3044 = vmax.f32 %v3028, 0.0
        %v3045 = vmax.f32 %v3029, 0.0
        %v3046 = vmax.f32 %v3030, 0.0
        %v3047 = vmax.f32 %v3031, 0.0
        %3048 = vst.msk [vmem:[%s258] sm:$0xff] %vm564, %v3032
        %3049 = vst.msk [vmem:[%s258 + $0x8] sm:$0xff] %vm564, %v3033
        %3050 = vst.msk [vmem:[%s258 + $0x10] sm:$0xff] %vm564, %v3034
        %3051 = vst.msk [vmem:[%s258 + $0x18] sm:$0xff] %vm564, %v3035
        %3052 = vst.msk [vmem:[%s258 + $0x20] sm:$0xff] %vm564, %v3036
        %3053 = vst.msk [vmem:[%s258 + $0x28] sm:$0xff] %vm564, %v3037
        %3054 = vst.msk [vmem:[%s258 + $0x30] sm:$0xff] %vm564, %v3038
        %3055 = vst.msk [vmem:[%s258 + $0x38] sm:$0xff] %vm564, %v3039
        %3056 = vst.msk [vmem:[%s258 + $0x40] sm:$0xff] %vm564, %v3040
        %3057 = vst.msk [vmem:[%s258 + $0x48] sm:$0xff] %vm564, %v3041
        %3058 = vst.msk [vmem:[%s258 + $0x50] sm:$0xff] %vm564, %v3042
        %3059 = vst.msk [vmem:[%s258 + $0x58] sm:$0xff] %vm564, %v3043
        %3060 = vst.msk [vmem:[%s258 + $0x60] sm:$0xff] %vm564, %v3044
        %3061 = vst.msk [vmem:[%s258 + $0x68] sm:$0xff] %vm564, %v3045
        %3062 = vst.msk [vmem:[%s258 + $0x70] sm:$0xff] %vm564, %v3046
        %3063 = vst.msk [vmem:[%s258 + $0x78] sm:$0xff] %vm564, %v3047
        %s3064 = sand.u32 %s157, 1
        %s3065 = scalar_lea.sflag [#allocation3], %s3064
        %s3066 = sand.u32 %s157, 1
        %s3067 = smul.addr %s3066, 128
        %s3068 = scalar_lea.vmem [#allocation2], %s3067
        // Predicated region
        $region37: #{tpu_custom_call.1} parent=35 // pred_check
          %p3069 = pneg %p167
        $region38: #{tpu_custom_call.1} parent=35 // pred_check_branch
          %3071 = sbr.rel (%p3069) target = $region40
        $region39: #{tpu_custom_call.1} parent=35 // pred_region
          %s3072 = smul.u32 8, %s25
          %s3074 = ssub.s32 2048, 2048
          %3075 = vsyncadd %s3065, %s3074
          %s3076 = smul.addr %s3072, 2
          %s3077 = sadd.s32 %s24, %s3076
          %s3078 = smul.addr %s23, 32
          %s3079 = sadd.s32 %s3077, %s3078
          %s3080 = smul.addr %s3079, 128
          %s3081 = scalar_lea.hbm %s4, %s3080
          %s3082 = sshll.u32 %s3068, 4
          %s3083 = int_to_ptr.vmem [resolvable:$true] %s3082
          %3088 = dma.vmem_to_hbm [thread:$0]  %s3083, 2048, %s3081, %s3065, 128, 128, 8
        $region40: #{tpu_custom_call.1} parent=35 // pred_fallthru
          _
      $region36: #{tpu_custom_call.1} parent=5 // pred_fallthru
        _
      %p3089 = scmp.le.s32.totalorder 2, %s13
      // Predicated region
      $region41: #{tpu_custom_call.1} parent=5 // pred_check
        %p3090 = pneg %p3089
      $region42: #{tpu_custom_call.1} parent=5 // pred_check_branch
        %3092 = sbr.rel (%p3090) target = $region44
      $region43: #{tpu_custom_call.1} parent=5 // pred_region
        %s3093 = ssub.s32 %s13, 2
        // Predicated region
        $region45: #{tpu_custom_call.1} parent=43 // pred_check
          %p3094 = pneg %p173
        $region46: #{tpu_custom_call.1} parent=43 // pred_check_branch
          %3096 = sbr.rel (%p3094) target = $region48
        $region47: #{tpu_custom_call.1} parent=43 // pred_region
          %s3097 = sand.u32 %s158, 1
          %s3098 = scalar_lea.sflag [#allocation3], %s3097
          %s3099 = sand.u32 %s158, 1
          %s3100 = smul.addr %s3099, 128
          %s3101 = scalar_lea.vmem [#allocation2], %s3100
          %3102 = dma.done %s3098, 2048
        $region48: #{tpu_custom_call.1} parent=43 // pred_fallthru
          _
      $region44: #{tpu_custom_call.1} parent=5 // pred_fallthru
        _
    $region6: #{tpu_custom_call.1} parent=1 // loop_footer
      %s17 = sadd.s32 1, %s13
    $region7: #{tpu_custom_call.1} parent=1 // loop_footer_branch
      %12 = sbr.rel target = $region3
    $region8: #{tpu_custom_call.1} parent=1 // loop_exit
      _
    %3103 = vsyncpa [#allocation3], 1
    %s3104 = scalar_lea.sflag [#allocation3], 1
    %3105 = vsyncpa %s3104, 1

</llo_original>
